<compile_context>
chip_gen: v7x
topology: tpu7x:2x2x1
jax: 0.10.0
libtpu: 0.0.40
codegen_flags: <defaults>
</compile_context>

<pallas_src>
import jax
import jax.numpy as jnp
from jax.experimental import pallas as pl
from jax.experimental.pallas import tpu as pltpu

H1, H2 = 400, 300          # true hidden widths (PyTorch module)
H1P, H2P = 512, 384        # lane-aligned padded widths
L1W = 2 * H1P              # 1024  : fused layer-1 output width (both heads)
L2W = 2 * H2P              # 768   : concat of both heads' layer-2 outputs
OUTW = 128                 # lane-dense output width (q1 in lane 0, q2 in lane 1)
BTOT = L1W + L2W + OUTW    # 1920  : packed bias width


def _critic_kernel(x_ref, u_ref, wx_ref, wu_ref, w2_ref, w5_ref, wo_ref, b_ref,
                   out_ref):
    """One batch tile of the fused twin-head critic.

    x_ref : (TB, S)        u_ref : (TB, A)
    wx_ref: (S, 1024)      wu_ref: (A, 1024)        fused+padded layer 1
    w2_ref: (512, 384)     w5_ref: (512, 384)       padded layer 2 per head
    wo_ref: (768, 128)     block-diag padded output layer (q1 lane0, q2 lane1)
    b_ref : (1, 1920)      packed biases [b1|b4 | b2|b5 | b_out]
    out_ref: (TB, 128)
    """
    wdt = wx_ref.dtype
    x = x_ref[...].astype(wdt)
    u = u_ref[...].astype(wdt)

    # ---- fused layer 1 (both heads), lane-aligned: (TB, 1024) ----
    hg = (jnp.dot(x, wx_ref[...], preferred_element_type=jnp.float32)
          + jnp.dot(u, wu_ref[...], preferred_element_type=jnp.float32)
          + b_ref[:, 0:L1W])
    hg = jnp.maximum(hg, 0.0)
    h = hg[:, 0:H1P]          # head 1, split exactly on a 128-lane boundary
    g = hg[:, H1P:L1W]        # head 2

    # ---- layer 2 per head: (TB, 384) each ----
    h2 = jnp.maximum(
        jnp.dot(h.astype(wdt), w2_ref[...], preferred_element_type=jnp.float32)
        + b_ref[:, L1W:L1W + H2P], 0.0)
    g2 = jnp.maximum(
        jnp.dot(g.astype(wdt), w5_ref[...], preferred_element_type=jnp.float32)
        + b_ref[:, L1W + H2P:L1W + L2W], 0.0)

    # ---- fused output layer: block-diag (768 -> 128), lane-dense store ----
    q = (jnp.dot(h2.astype(wdt), wo_ref[0:H2P, :],
                 preferred_element_type=jnp.float32)
         + jnp.dot(g2.astype(wdt), wo_ref[H2P:L2W, :],
                   preferred_element_type=jnp.float32)
         + b_ref[:, L1W + L2W:BTOT])
    out_ref[...] = q


def init_critic_params(key, state_dim, action_dim):
    """nn.Linear-style init. Weights stored as (in_features, out_features),
    biases as (1, out_features)."""
    dims = [
        ("1", state_dim + action_dim, H1),
        ("2", H1, H2),
        ("3", H2, 1),
        ("4", state_dim + action_dim, H1),
        ("5", H1, H2),
        ("6", H2, 1),
    ]
    params = {}
    for name, fan_in, fan_out in dims:
        key, kw, kb = jax.random.split(key, 3)
        bound = 1.0 / jnp.sqrt(jnp.float32(fan_in))
        params[f"w{name}"] = jax.random.uniform(
            kw, (fan_in, fan_out), jnp.float32, minval=-bound, maxval=bound)
        params[f"b{name}"] = jax.random.uniform(
            kb, (1, fan_out), jnp.float32, minval=-bound, maxval=bound)
    return params


def pack_critic_params(params, state_dim, action_dim, dtype=jnp.float32):
    """Host-side packing: fuse/zero-pad weights to lane-aligned slabs and pack
    all biases into one row. `dtype=jnp.bfloat16` halves weight DMA on
    v6e/v7x; accumulation stays fp32 in the kernel."""
    S, A = state_dim, action_dim

    def pad(w, rows, cols):
        out = jnp.zeros((rows, cols), jnp.float32)
        return out.at[:w.shape[0], :w.shape[1]].set(w)

    # layer 1: both heads side by side, each padded 400 -> 512
    w14 = jnp.concatenate(
        [pad(params["w1"], S + A, H1P), pad(params["w4"], S + A, H1P)], axis=1)
    wx = w14[:S, :].astype(dtype)                 # (S, 1024)
    wu = w14[S:, :].astype(dtype)                 # (A, 1024)
    b14 = jnp.concatenate(
        [pad(params["b1"], 1, H1P), pad(params["b4"], 1, H1P)], axis=1)

    # layer 2: per-head, padded (512, 384)
    w2p = pad(params["w2"], H1P, H2P).astype(dtype)
    w5p = pad(params["w5"], H1P, H2P).astype(dtype)
    b25 = jnp.concatenate(
        [pad(params["b2"], 1, H2P), pad(params["b5"], 1, H2P)], axis=1)

    # output layer: block-diagonal, padded to (768, 128); q1->lane0, q2->lane1
    w_out = jnp.zeros((L2W, OUTW), jnp.float32)
    w_out = w_out.at[:H2, 0].set(params["w3"][:, 0])
    w_out = w_out.at[H2P:H2P + H2, 1].set(params["w6"][:, 0])
    w_out = w_out.astype(dtype)
    b_out = (jnp.zeros((1, OUTW), jnp.float32)
             .at[0, 0].set(params["b3"][0, 0])
             .at[0, 1].set(params["b6"][0, 0]))

    b_all = jnp.concatenate([b14, b25, b_out], axis=1)   # (1, 1920), fp32
    return dict(wx=wx, wu=wu, w2p=w2p, w5p=w5p, w_out=w_out, b_all=b_all)


def _round_up(a, m):
    return ((a + m - 1) // m) * m


def critic_forward(x, u, packed, *, block_b=256):
    """Pallas-backed Critic.forward(x, u) -> (q1, q2), each (B, 1) fp32."""
    B, S = x.shape
    A = u.shape[1]

    # batch tiling: small batches run as one full-array block (rounded to 8),
    # large batches are tiled so activations pipeline and VMEM stays bounded
    # (fits the 16 MiB scoped default on v5e / 32 MiB on v6e/v7x).
    TB = block_b if B >= block_b else _round_up(B, 8)
    B_pad = _round_up(B, TB)
    if B_pad != B:
        x = jnp.pad(x, ((0, B_pad - B), (0, 0)))
        u = jnp.pad(u, ((0, B_pad - B), (0, 0)))

    const = lambda i: (0, 0)   # weights resident across all batch tiles
    tile = lambda i: (i, 0)

    out = pl.pallas_call(
        _critic_kernel,
        out_shape=jax.ShapeDtypeStruct((B_pad, OUTW), jnp.float32),
        grid_spec=pltpu.PrefetchScalarGridSpec(
            num_scalar_prefetch=0,
            grid=(B_pad // TB,),
            in_specs=[
                pl.BlockSpec((TB, S), tile),
                pl.BlockSpec((TB, A), tile),
                pl.BlockSpec((S, L1W), const),
                pl.BlockSpec((A, L1W), const),
                pl.BlockSpec((H1P, H2P), const),
                pl.BlockSpec((H1P, H2P), const),
                pl.BlockSpec((L2W, OUTW), const),
                pl.BlockSpec((1, BTOT), const),
            ],
            out_specs=pl.BlockSpec((TB, OUTW), tile),
        ),
        compiler_params=pltpu.CompilerParams(
            dimension_semantics=("parallel",)),
    )(x, u, packed["wx"], packed["wu"], packed["w2p"], packed["w5p"],
      packed["w_out"], packed["b_all"])

    q1 = out[:B, 0:1]
    q2 = out[:B, 1:2]
    return q1, q2


def critic_forward_ref(x, u, params):
    """Pure-JAX reference (unpadded, unpacked) for correctness checking."""
    xu = jnp.concatenate([x, u], axis=1)
    h = jax.nn.relu(xu @ params["w1"] + params["b1"])
    h = jax.nn.relu(h @ params["w2"] + params["b2"])
    q1 = h @ params["w3"] + params["b3"]
    g = jax.nn.relu(xu @ params["w4"] + params["b4"])
    g = jax.nn.relu(g @ params["w5"] + params["b5"])
    q2 = g @ params["w6"] + params["b6"]
    return q1, q2


if __name__ == "__main__":
    state_dim, action_dim, batch = 8, 4, 4

    key = jax.random.PRNGKey(0)
    kp, kx, ku = jax.random.split(key, 3)
    params = init_critic_params(kp, state_dim, action_dim)
    packed = pack_critic_params(params, state_dim, action_dim,
                                dtype=jnp.float32)  # set bfloat16 on v6e/v7x

    x = jax.random.normal(kx, (batch, state_dim), jnp.float32)
    u = jax.random.normal(ku, (batch, action_dim), jnp.float32)

    q1, q2 = jax.block_until_ready(critic_forward(x, u, packed))
    r1, r2 = critic_forward_ref(x, u, params)

    assert q1.shape == (batch, 1) and q2.shape == (batch, 1)
    assert jnp.allclose(q1, r1, atol=1e-4, rtol=1e-4), (q1, r1)
    assert jnp.allclose(q2, r2, atol=1e-4, rtol=1e-4), (q2, r2)

    print("KERNEL_OK")
</pallas_src>

<mosaic_0001>
module attributes {stable_mosaic.version = 11 : i64} {
  func.func @_critic_kernel(%arg0: i32, %arg1: memref<8x8xf32, #tpu.memory_space<vmem>>, %arg2: memref<8x4xf32, #tpu.memory_space<vmem>>, %arg3: memref<8x1024xf32, #tpu.memory_space<vmem>>, %arg4: memref<4x1024xf32, #tpu.memory_space<vmem>>, %arg5: memref<512x384xf32, #tpu.memory_space<vmem>>, %arg6: memref<512x384xf32, #tpu.memory_space<vmem>>, %arg7: memref<768x128xf32, #tpu.memory_space<vmem>>, %arg8: memref<1x1920xf32, #tpu.memory_space<vmem>>, %arg9: memref<8x128xf32, #tpu.memory_space<vmem>>) attributes {dimension_semantics = [#tpu.dimension_semantics<parallel>], iteration_bounds = array<i64: 1>, scalar_prefetch = 0 : i64, scratch_operands = 0 : i64, tpu.core_type = #tpu.core_type<tc>, window_params = [{transform_indices = @transform_0, window_bounds = array<i64: 8, 8>}, {transform_indices = @transform_1, window_bounds = array<i64: 8, 4>}, {pipeline_mode = #tpu.pipeline_mode<synchronous>, transform_indices = @transform_2, window_bounds = array<i64: 8, 1024>}, {pipeline_mode = #tpu.pipeline_mode<synchronous>, transform_indices = @transform_3, window_bounds = array<i64: 4, 1024>}, {pipeline_mode = #tpu.pipeline_mode<synchronous>, transform_indices = @transform_4, window_bounds = array<i64: 512, 384>}, {pipeline_mode = #tpu.pipeline_mode<synchronous>, transform_indices = @transform_5, window_bounds = array<i64: 512, 384>}, {pipeline_mode = #tpu.pipeline_mode<synchronous>, transform_indices = @transform_6, window_bounds = array<i64: 768, 128>}, {pipeline_mode = #tpu.pipeline_mode<synchronous>, transform_indices = @transform_7, window_bounds = array<i64: 1, 1920>}, {transform_indices = @transform_8, window_bounds = array<i64: 8, 128>}]} {
    %c0 = arith.constant 0 : index
    %c0_0 = arith.constant 0 : index
    %0 = vector.load %arg1[%c0, %c0_0] : memref<8x8xf32, #tpu.memory_space<vmem>>, vector<8x8xf32>
    %c0_1 = arith.constant 0 : index
    %c0_2 = arith.constant 0 : index
    %1 = vector.load %arg2[%c0_1, %c0_2] : memref<8x4xf32, #tpu.memory_space<vmem>>, vector<8x4xf32>
    %c0_3 = arith.constant 0 : index
    %c0_4 = arith.constant 0 : index
    %2 = vector.load %arg3[%c0_3, %c0_4] : memref<8x1024xf32, #tpu.memory_space<vmem>>, vector<8x1024xf32>
    %cst = arith.constant dense<0.000000e+00> : vector<8x1024xf32>
    %3 = tpu.matmul %0, %2, %cst {dimension_numbers = #tpu.dot_dimension_numbers<[1], [0], [0], [1], [0, 0, 1, 1], [], []>} : vector<8x8xf32>, vector<8x1024xf32>, vector<8x1024xf32> -> vector<8x1024xf32>
    %c0_5 = arith.constant 0 : index
    %c0_6 = arith.constant 0 : index
    %4 = vector.load %arg4[%c0_5, %c0_6] : memref<4x1024xf32, #tpu.memory_space<vmem>>, vector<4x1024xf32>
    %cst_7 = arith.constant dense<0.000000e+00> : vector<8x1024xf32>
    %5 = tpu.matmul %1, %4, %cst_7 {dimension_numbers = #tpu.dot_dimension_numbers<[1], [0], [0], [1], [0, 0, 1, 1], [], []>} : vector<8x4xf32>, vector<4x1024xf32>, vector<8x1024xf32> -> vector<8x1024xf32>
    %6 = arith.addf %3, %5 : vector<8x1024xf32>
    %c0_8 = arith.constant 0 : index
    %c0_9 = arith.constant 0 : index
    %7 = vector.load %arg8[%c0_8, %c0_9] : memref<1x1920xf32, #tpu.memory_space<vmem>>, vector<1x1024xf32>
    %8 = vector.broadcast %7 : vector<1x1024xf32> to vector<8x1024xf32>
    %9 = arith.addf %6, %8 : vector<8x1024xf32>
    %cst_10 = arith.constant 0.000000e+00 : f32
    %10 = vector.broadcast %cst_10 : f32 to vector<8x1024xf32>
    %11 = arith.maximumf %9, %10 : vector<8x1024xf32>
    %12 = vector.extract_strided_slice %11 {offsets = [0, 0], sizes = [8, 512], strides = [1, 1]} : vector<8x1024xf32> to vector<8x512xf32>
    %13 = vector.extract_strided_slice %11 {offsets = [0, 512], sizes = [8, 512], strides = [1, 1]} : vector<8x1024xf32> to vector<8x512xf32>
    %c0_11 = arith.constant 0 : index
    %c0_12 = arith.constant 0 : index
    %14 = vector.load %arg5[%c0_11, %c0_12] : memref<512x384xf32, #tpu.memory_space<vmem>>, vector<512x384xf32>
    %cst_13 = arith.constant dense<0.000000e+00> : vector<8x384xf32>
    %15 = tpu.matmul %12, %14, %cst_13 {dimension_numbers = #tpu.dot_dimension_numbers<[1], [0], [0], [1], [0, 0, 1, 1], [], []>} : vector<8x512xf32>, vector<512x384xf32>, vector<8x384xf32> -> vector<8x384xf32>
    %c0_14 = arith.constant 0 : index
    %c1024 = arith.constant 1024 : index
    %16 = vector.load %arg8[%c0_14, %c1024] : memref<1x1920xf32, #tpu.memory_space<vmem>>, vector<1x384xf32>
    %17 = vector.broadcast %16 : vector<1x384xf32> to vector<8x384xf32>
    %18 = arith.addf %15, %17 : vector<8x384xf32>
    %cst_15 = arith.constant 0.000000e+00 : f32
    %19 = vector.broadcast %cst_15 : f32 to vector<8x384xf32>
    %20 = arith.maximumf %18, %19 : vector<8x384xf32>
    %c0_16 = arith.constant 0 : index
    %c0_17 = arith.constant 0 : index
    %21 = vector.load %arg6[%c0_16, %c0_17] : memref<512x384xf32, #tpu.memory_space<vmem>>, vector<512x384xf32>
    %cst_18 = arith.constant dense<0.000000e+00> : vector<8x384xf32>
    %22 = tpu.matmul %13, %21, %cst_18 {dimension_numbers = #tpu.dot_dimension_numbers<[1], [0], [0], [1], [0, 0, 1, 1], [], []>} : vector<8x512xf32>, vector<512x384xf32>, vector<8x384xf32> -> vector<8x384xf32>
    %c0_19 = arith.constant 0 : index
    %c1408 = arith.constant 1408 : index
    %23 = vector.load %arg8[%c0_19, %c1408] : memref<1x1920xf32, #tpu.memory_space<vmem>>, vector<1x384xf32>
    %24 = vector.broadcast %23 : vector<1x384xf32> to vector<8x384xf32>
    %25 = arith.addf %22, %24 : vector<8x384xf32>
    %cst_20 = arith.constant 0.000000e+00 : f32
    %26 = vector.broadcast %cst_20 : f32 to vector<8x384xf32>
    %27 = arith.maximumf %25, %26 : vector<8x384xf32>
    %c0_21 = arith.constant 0 : index
    %c0_22 = arith.constant 0 : index
    %28 = vector.load %arg7[%c0_21, %c0_22] : memref<768x128xf32, #tpu.memory_space<vmem>>, vector<384x128xf32>
    %cst_23 = arith.constant dense<0.000000e+00> : vector<8x128xf32>
    %29 = tpu.matmul %20, %28, %cst_23 {dimension_numbers = #tpu.dot_dimension_numbers<[1], [0], [0], [1], [0, 0, 1, 1], [], []>} : vector<8x384xf32>, vector<384x128xf32>, vector<8x128xf32> -> vector<8x128xf32>
    %c384 = arith.constant 384 : index
    %c0_24 = arith.constant 0 : index
    %30 = vector.load %arg7[%c384, %c0_24] : memref<768x128xf32, #tpu.memory_space<vmem>>, vector<384x128xf32>
    %cst_25 = arith.constant dense<0.000000e+00> : vector<8x128xf32>
    %31 = tpu.matmul %27, %30, %cst_25 {dimension_numbers = #tpu.dot_dimension_numbers<[1], [0], [0], [1], [0, 0, 1, 1], [], []>} : vector<8x384xf32>, vector<384x128xf32>, vector<8x128xf32> -> vector<8x128xf32>
    %32 = arith.addf %29, %31 : vector<8x128xf32>
    %c0_26 = arith.constant 0 : index
    %c1792 = arith.constant 1792 : index
    %33 = vector.load %arg8[%c0_26, %c1792] : memref<1x1920xf32, #tpu.memory_space<vmem>>, vector<1x128xf32>
    %34 = vector.broadcast %33 : vector<1x128xf32> to vector<8x128xf32>
    %35 = arith.addf %32, %34 : vector<8x128xf32>
    %c0_27 = arith.constant 0 : index
    %c0_28 = arith.constant 0 : index
    %36 = vector.load %arg9[%c0_27, %c0_28] : memref<8x128xf32, #tpu.memory_space<vmem>>, vector<8x128xf32>
    tpu.vector_store %arg9[%c0_27, %c0_28], %35 {strides = array<i32>} : memref<8x128xf32, #tpu.memory_space<vmem>>, vector<8x128xf32>,
    return
  }
  func.func @transform_0(%arg0: i32) -> (i32, i32) {
    %c0_i32 = arith.constant 0 : i32
    %c0_i32_0 = arith.constant 0 : i32
    return %arg0, %c0_i32 : i32, i32
  }
  func.func @transform_1(%arg0: i32) -> (i32, i32) {
    %c0_i32 = arith.constant 0 : i32
    %c0_i32_0 = arith.constant 0 : i32
    return %arg0, %c0_i32 : i32, i32
  }
  func.func @transform_2(%arg0: i32) -> (i32, i32) {
    %c0_i32 = arith.constant 0 : i32
    %c0_i32_0 = arith.constant 0 : i32
    %c0_i32_1 = arith.constant 0 : i32
    return %c0_i32, %c0_i32_0 : i32, i32
  }
  func.func @transform_3(%arg0: i32) -> (i32, i32) {
    %c0_i32 = arith.constant 0 : i32
    %c0_i32_0 = arith.constant 0 : i32
    %c0_i32_1 = arith.constant 0 : i32
    return %c0_i32, %c0_i32_0 : i32, i32
  }
  func.func @transform_4(%arg0: i32) -> (i32, i32) {
    %c0_i32 = arith.constant 0 : i32
    %c0_i32_0 = arith.constant 0 : i32
    %c0_i32_1 = arith.constant 0 : i32
    return %c0_i32, %c0_i32_0 : i32, i32
  }
  func.func @transform_5(%arg0: i32) -> (i32, i32) {
    %c0_i32 = arith.constant 0 : i32
    %c0_i32_0 = arith.constant 0 : i32
    %c0_i32_1 = arith.constant 0 : i32
    return %c0_i32, %c0_i32_0 : i32, i32
  }
  func.func @transform_6(%arg0: i32) -> (i32, i32) {
    %c0_i32 = arith.constant 0 : i32
    %c0_i32_0 = arith.constant 0 : i32
    %c0_i32_1 = arith.constant 0 : i32
    return %c0_i32, %c0_i32_0 : i32, i32
  }
  func.func @transform_7(%arg0: i32) -> (i32, i32) {
    %c0_i32 = arith.constant 0 : i32
    %c0_i32_0 = arith.constant 0 : i32
    %c0_i32_1 = arith.constant 0 : i32
    return %c0_i32, %c0_i32_0 : i32, i32
  }
  func.func @transform_8(%arg0: i32) -> (i32, i32) {
    %c0_i32 = arith.constant 0 : i32
    %c0_i32_0 = arith.constant 0 : i32
    return %arg0, %c0_i32 : i32, i32
  }
}

</mosaic_0001>

<llo_original>
// kernel: tpu_custom_call.1
$region0: #{tpu_custom_call.1}
  #allocation0 [shape = 'u32[]', space=smem, size = 0x4, offset = 0x4, fixed_abs, tag = 'smem constant byte address 0x4 - core index']
  #allocation1 [shape = 'u32[144,128]{1,0:T(1,128)}', space=vmem, size = 0x12000, scoped, tag = 'internal scratch']
  %s0 = inlined_call_operand.vmem [shape: f32[8,8], index: 0, kind: input, shape index: {}]
  %s1 = inlined_call_operand.vmem [shape: f32[8,4], index: 1, kind: input, shape index: {}]
  %s2 = inlined_call_operand.hbm [shape: f32[8,1024], index: 2, kind: input, shape index: {}]
  %s3 = inlined_call_operand.hbm [shape: f32[4,1024], index: 3, kind: input, shape index: {}]
  %s4 = inlined_call_operand.hbm [shape: f32[512,384], index: 4, kind: input, shape index: {}]
  %s5 = inlined_call_operand.hbm [shape: f32[512,384], index: 5, kind: input, shape index: {}]
  %s6 = inlined_call_operand.hbm [shape: f32[768,128], index: 6, kind: input, shape index: {}]
  %s7 = inlined_call_operand.vmem [shape: f32[1,1920], index: 7, kind: input, shape index: {}]
  %s8 = inlined_call_operand.hbm [shape: f32[8,128], index: 8, kind: output, shape index: {}]
  %s9 = sld [smem:[#allocation0]]
  $region62: #{tpu_custom_call.1} parent=0
    _
  %s11 = ssub.s32 1, %s9
  %s12 = scalar_select 0, %s11, %s9
  $region1: #{tpu_custom_call.1} parent=0
    #allocation2 [shape = 'u8[32768]{0}', space=vmem, size = 0x8000, scoped, tag = 'input window, operand 2, single buffered']
    #allocation3 [shape = 's32[1]{0}', space=sflag, size = 0x4, scoped, tag = 'scoped memory for tpu_custom_call.1']
    #allocation4 [shape = 's32[1]{0}', space=sflag, size = 0x4, scoped, tag = 'scoped memory for tpu_custom_call.1']
    #allocation5 [shape = 'u8[16384]{0}', space=vmem, size = 0x4000, scoped, tag = 'input window, operand 3, single buffered']
    #allocation6 [shape = 's32[1]{0}', space=sflag, size = 0x4, scoped, tag = 'scoped memory for tpu_custom_call.1']
    #allocation7 [shape = 'u8[786432]{0}', space=vmem, size = 0xc0000, scoped, tag = 'input window, operand 4, single buffered']
    #allocation8 [shape = 'u8[786432]{0}', space=vmem, size = 0xc0000, scoped, tag = 'input window, operand 5, single buffered']
    #allocation9 [shape = 's32[1]{0}', space=sflag, size = 0x4, scoped, tag = 'scoped memory for tpu_custom_call.1']
    #allocation10 [shape = 'u8[393216]{0}', space=vmem, size = 0x60000, scoped, tag = 'input window, operand 6, single buffered']
    #allocation11 [shape = 'u8[4096]{0}', space=vmem, size = 0x1000, scoped, tag = 'output window, operand 0, single buffered']
    %13 = vsyncpa [#allocation3], 0
    %14 = vsyncpa [#allocation6], 0
    %15 = vsyncpa [#allocation9], 0
    %16 = vsyncpa [#allocation4], 0
    // Predicated region
    $region2: #{tpu_custom_call.1} parent=1 // pred_check
      _
    $region3: #{tpu_custom_call.1} parent=1 // pred_check_branch
      %18 = sbr.rel (0) target = $region5
    $region4: #{tpu_custom_call.1} parent=1 // pred_region
      _
    $region5: #{tpu_custom_call.1} parent=1 // pred_fallthru
      _
    // Predicated region
    $region6: #{tpu_custom_call.1} parent=1 // pred_check
      _
    $region7: #{tpu_custom_call.1} parent=1 // pred_check_branch
      %20 = sbr.rel (0) target = $region9
    $region8: #{tpu_custom_call.1} parent=1 // pred_region
      _
    $region9: #{tpu_custom_call.1} parent=1 // pred_fallthru
      _
    // Predicated region
    $region10: #{tpu_custom_call.1} parent=1 // pred_check
      _
    $region11: #{tpu_custom_call.1} parent=1 // pred_check_branch
      %22 = sbr.rel (0) target = $region13
    $region12: #{tpu_custom_call.1} parent=1 // pred_region
      %s24 = ssub.s32 1024, 1024
      %25 = vsyncadd [#allocation3], %s24
      %s27 = sshll.u32 [#allocation2], 4
      %s28 = int_to_ptr.vmem [resolvable:$true] %s27
      %30 = dma.hbm_to_vmem [thread:$0]  %s2, 1024, %s28, [#allocation3]
    $region13: #{tpu_custom_call.1} parent=1 // pred_fallthru
      _
    // Predicated region
    $region14: #{tpu_custom_call.1} parent=1 // pred_check
      _
    $region15: #{tpu_custom_call.1} parent=1 // pred_check_branch
      %32 = sbr.rel (0) target = $region17
    $region16: #{tpu_custom_call.1} parent=1 // pred_region
      %s34 = ssub.s32 512, 512
      %35 = vsyncadd [#allocation6], %s34
      %s37 = sshll.u32 [#allocation5], 4
      %s38 = int_to_ptr.vmem [resolvable:$true] %s37
      %40 = dma.hbm_to_vmem [thread:$0]  %s3, 512, %s38, [#allocation6]
    $region17: #{tpu_custom_call.1} parent=1 // pred_fallthru
      _
    // Predicated region
    $region18: #{tpu_custom_call.1} parent=1 // pred_check
      _
    $region19: #{tpu_custom_call.1} parent=1 // pred_check_branch
      %42 = sbr.rel (0) target = $region21
    $region20: #{tpu_custom_call.1} parent=1 // pred_region
      %s44 = ssub.s32 24576, 24576
      %45 = vsyncadd [#allocation6], %s44
      %s46 = sshll.u32 [#allocation7], 4
      %s47 = int_to_ptr.vmem [resolvable:$true] %s46
      %52 = dma.hbm_to_vmem [thread:$0]  %s4, 24576, %s47, [#allocation6], 384, 384, 24
    $region21: #{tpu_custom_call.1} parent=1 // pred_fallthru
      _
    // Predicated region
    $region22: #{tpu_custom_call.1} parent=1 // pred_check
      _
    $region23: #{tpu_custom_call.1} parent=1 // pred_check_branch
      %54 = sbr.rel (0) target = $region25
    $region24: #{tpu_custom_call.1} parent=1 // pred_region
      %s56 = ssub.s32 24576, 24576
      %57 = vsyncadd [#allocation9], %s56
      %s58 = sshll.u32 [#allocation8], 4
      %s59 = int_to_ptr.vmem [resolvable:$true] %s58
      %64 = dma.hbm_to_vmem [thread:$0]  %s5, 24576, %s59, [#allocation9], 384, 384, 24
    $region25: #{tpu_custom_call.1} parent=1 // pred_fallthru
      _
    // Predicated region
    $region26: #{tpu_custom_call.1} parent=1 // pred_check
      _
    $region27: #{tpu_custom_call.1} parent=1 // pred_check_branch
      %66 = sbr.rel (0) target = $region29
    $region28: #{tpu_custom_call.1} parent=1 // pred_region
      %s68 = ssub.s32 12288, 12288
      %69 = vsyncadd [#allocation9], %s68
      %s70 = sshll.u32 [#allocation10], 4
      %s71 = int_to_ptr.vmem [resolvable:$true] %s70
      %76 = dma.hbm_to_vmem [thread:$0]  %s6, 12288, %s71, [#allocation9], 128, 128, 8
    $region29: #{tpu_custom_call.1} parent=1 // pred_fallthru
      _
    // Predicated region
    $region30: #{tpu_custom_call.1} parent=1 // pred_check
      _
    $region31: #{tpu_custom_call.1} parent=1 // pred_check_branch
      %78 = sbr.rel (0) target = $region33
    $region32: #{tpu_custom_call.1} parent=1 // pred_region
      _
    $region33: #{tpu_custom_call.1} parent=1 // pred_fallthru
      _
    // Predicated region
    $region34: #{tpu_custom_call.1} parent=1 // pred_check
      _
    $region35: #{tpu_custom_call.1} parent=1 // pred_check_branch
      %80 = sbr.rel (0) target = $region37
    $region36: #{tpu_custom_call.1} parent=1 // pred_region
      %81 = dma.done [#allocation3], 1024
    $region37: #{tpu_custom_call.1} parent=1 // pred_fallthru
      _
    // Predicated region
    $region38: #{tpu_custom_call.1} parent=1 // pred_check
      _
    $region39: #{tpu_custom_call.1} parent=1 // pred_check_branch
      %83 = sbr.rel (0) target = $region41
    $region40: #{tpu_custom_call.1} parent=1 // pred_region
      %84 = dma.done [#allocation6], 512
    $region41: #{tpu_custom_call.1} parent=1 // pred_fallthru
      _
    // Predicated region
    $region42: #{tpu_custom_call.1} parent=1 // pred_check
      _
    $region43: #{tpu_custom_call.1} parent=1 // pred_check_branch
      %86 = sbr.rel (0) target = $region45
    $region44: #{tpu_custom_call.1} parent=1 // pred_region
      %87 = dma.done [#allocation6], 24576
    $region45: #{tpu_custom_call.1} parent=1 // pred_fallthru
      _
    // Predicated region
    $region46: #{tpu_custom_call.1} parent=1 // pred_check
      _
    $region47: #{tpu_custom_call.1} parent=1 // pred_check_branch
      %89 = sbr.rel (0) target = $region49
    $region48: #{tpu_custom_call.1} parent=1 // pred_region
      %90 = dma.done [#allocation9], 24576
    $region49: #{tpu_custom_call.1} parent=1 // pred_fallthru
      _
    // Predicated region
    $region50: #{tpu_custom_call.1} parent=1 // pred_check
      _
    $region51: #{tpu_custom_call.1} parent=1 // pred_check_branch
      %92 = sbr.rel (0) target = $region53
    $region52: #{tpu_custom_call.1} parent=1 // pred_region
      %93 = dma.done [#allocation9], 12288
    $region53: #{tpu_custom_call.1} parent=1 // pred_fallthru
      _
    %v94 = vld [vmem:[%s0] sm:$0xff]
    %v95 = vld [vmem:[%s1] sm:$0xff]
    %v96 = vld [vmem:[#allocation2] sm:$0xff]
    %v97 = vld [vmem:[#allocation2 + $0x8] sm:$0xff]
    %v98 = vld [vmem:[#allocation2 + $0x10] sm:$0xff]
    %v99 = vld [vmem:[#allocation2 + $0x18] sm:$0xff]
    %v100 = vld [vmem:[#allocation2 + $0x20] sm:$0xff]
    %v101 = vld [vmem:[#allocation2 + $0x28] sm:$0xff]
    %v102 = vld [vmem:[#allocation2 + $0x30] sm:$0xff]
    %v103 = vld [vmem:[#allocation2 + $0x38] sm:$0xff]
    %v104 = vld [vmem:[#allocation5] sm:$0xff]
    %v105 = vld [vmem:[#allocation5 + $0x8] sm:$0xff]
    %v106 = vld [vmem:[#allocation5 + $0x10] sm:$0xff]
    %v107 = vld [vmem:[#allocation5 + $0x18] sm:$0xff]
    %v112 = vcombine.high %v104, %v104
    %v113 = vcombine.high %v105, %v105
    %v114 = vcombine.high %v106, %v106
    %v115 = vcombine.high %v107, %v107
    %vm116 = vcmask 31744
    %v118 = vsel %vm116, %v95, 0
    %vm120 = vcmask 1043456
    %v121 = vsel %vm120, %v104, 0
    %v123 = vsel %vm120, %v112, 0
    %v125 = vsel %vm120, %v105, 0
    %v127 = vsel %vm120, %v113, 0
    %v129 = vsel %vm120, %v106, 0
    %v131 = vsel %vm120, %v114, 0
    %v133 = vsel %vm120, %v107, 0
    %v135 = vsel %vm120, %v115, 0
    %137 = vmatprep.subr.mxu0 %v123
    %138 = vmatpush1.msra.mxu0 %v121
    %139 = vmatprep.subr.mxu0 0.0
    %140 = vmatpush1.msra.mxu0 0.0
    %141 = vmatprep.subr.mxu0 0.0
    %142 = vmatpush1.msra.mxu0 0.0
    %143 = vmatprep.subr.mxu0 0.0
    %144 = vmatpush1.msra.mxu0 0.0
    %145 = vmatprep.subr.mxu0 0.0
    %146 = vmatpush1.msra.mxu0 0.0
    %147 = vmatprep.subr.mxu0 0.0
    %148 = vmatpush1.msra.mxu0 0.0
    %149 = vmatprep.subr.mxu0 0.0
    %150 = vmatpush1.msra.mxu0 0.0
    %151 = vmatprep.subr.mxu0 0.0
    %152 = vmatpush1.msra.mxu0 0.0
    %153 = vmatprep.subr.mxu0 0.0
    %154 = vmatpush1.msra.mxu0 0.0
    %155 = vmatprep.subr.mxu0 0.0
    %156 = vmatpush1.msra.mxu0 0.0
    %157 = vmatprep.subr.mxu0 0.0
    %158 = vmatpush1.msra.mxu0 0.0
    %159 = vmatprep.subr.mxu0 0.0
    %160 = vmatpush1.msra.mxu0 0.0
    %161 = vmatprep.subr.mxu0 0.0
    %162 = vmatpush1.msra.mxu0 0.0
    %163 = vmatprep.subr.mxu0 0.0
    %164 = vmatpush1.msra.mxu0 0.0
    %165 = vmatprep.subr.mxu0 0.0
    %166 = vmatpush1.msra.mxu0 0.0
    %167 = vmatprep.subr.mxu0 0.0
    %168 = vmatpush1.msra.mxu0 0.0
    %169 = vmatprep.subr.mxu0 0.0
    %170 = vmatpush1.msra.mxu0 0.0
    %171 = vmatprep.subr.mxu0 0.0
    %172 = vmatpush1.msra.mxu0 0.0
    %173 = vmatprep.subr.mxu0 0.0
    %174 = vmatpush1.msra.mxu0 0.0
    %175 = vmatprep.subr.mxu0 0.0
    %176 = vmatpush1.msra.mxu0 0.0
    %177 = vmatprep.subr.mxu0 0.0
    %178 = vmatpush1.msra.mxu0 0.0
    %179 = vmatprep.subr.mxu0 0.0
    %180 = vmatpush1.msra.mxu0 0.0
    %181 = vmatprep.subr.mxu0 0.0
    %182 = vmatpush1.msra.mxu0 0.0
    %183 = vmatprep.subr.mxu0 0.0
    %184 = vmatpush1.msra.mxu0 0.0
    %185 = vmatprep.subr.mxu0 0.0
    %186 = vmatpush1.msra.mxu0 0.0
    %187 = vmatprep.subr.mxu0 0.0
    %188 = vmatpush1.msra.mxu0 0.0
    %189 = vmatprep.subr.mxu0 0.0
    %190 = vmatpush1.msra.mxu0 0.0
    %191 = vmatprep.subr.mxu0 0.0
    %192 = vmatpush1.msra.mxu0 0.0
    %193 = vmatprep.subr.mxu0 0.0
    %194 = vmatpush1.msra.mxu0 0.0
    %195 = vmatprep.subr.mxu0 0.0
    %196 = vmatpush1.msra.mxu0 0.0
    %197 = vmatprep.subr.mxu0 0.0
    %198 = vmatpush1.msra.mxu0 0.0
    %199 = vmatprep.subr.mxu0 0.0
    %200 = vmatpush1.msra.mxu0 0.0
    %201 = vmatprep.mubr.f32.mxu0 0.0
    %202 = vmatmul.mubr.f32.gmra.mrb[0].mxu0 %v118
    %v203 = vpop.f32.mrb[0].mxu0
    %v204 = vadd.f32 0.0, %v203
    %v205 = vpop.f32.mrb[0].mxu0
    %v206 = vadd.f32 0.0, %v205
    %207 = vdwg.mxu0
    %208 = vmatprep.subr.mxu0 %v127
    %209 = vmatpush1.msra.mxu0 %v125
    %210 = vmatprep.subr.mxu0 0.0
    %211 = vmatpush1.msra.mxu0 0.0
    %212 = vmatprep.subr.mxu0 0.0
    %213 = vmatpush1.msra.mxu0 0.0
    %214 = vmatprep.subr.mxu0 0.0
    %215 = vmatpush1.msra.mxu0 0.0
    %216 = vmatprep.subr.mxu0 0.0
    %217 = vmatpush1.msra.mxu0 0.0
    %218 = vmatprep.subr.mxu0 0.0
    %219 = vmatpush1.msra.mxu0 0.0
    %220 = vmatprep.subr.mxu0 0.0
    %221 = vmatpush1.msra.mxu0 0.0
    %222 = vmatprep.subr.mxu0 0.0
    %223 = vmatpush1.msra.mxu0 0.0
    %224 = vmatprep.subr.mxu0 0.0
    %225 = vmatpush1.msra.mxu0 0.0
    %226 = vmatprep.subr.mxu0 0.0
    %227 = vmatpush1.msra.mxu0 0.0
    %228 = vmatprep.subr.mxu0 0.0
    %229 = vmatpush1.msra.mxu0 0.0
    %230 = vmatprep.subr.mxu0 0.0
    %231 = vmatpush1.msra.mxu0 0.0
    %232 = vmatprep.subr.mxu0 0.0
    %233 = vmatpush1.msra.mxu0 0.0
    %234 = vmatprep.subr.mxu0 0.0
    %235 = vmatpush1.msra.mxu0 0.0
    %236 = vmatprep.subr.mxu0 0.0
    %237 = vmatpush1.msra.mxu0 0.0
    %238 = vmatprep.subr.mxu0 0.0
    %239 = vmatpush1.msra.mxu0 0.0
    %240 = vmatprep.subr.mxu0 0.0
    %241 = vmatpush1.msra.mxu0 0.0
    %242 = vmatprep.subr.mxu0 0.0
    %243 = vmatpush1.msra.mxu0 0.0
    %244 = vmatprep.subr.mxu0 0.0
    %245 = vmatpush1.msra.mxu0 0.0
    %246 = vmatprep.subr.mxu0 0.0
    %247 = vmatpush1.msra.mxu0 0.0
    %248 = vmatprep.subr.mxu0 0.0
    %249 = vmatpush1.msra.mxu0 0.0
    %250 = vmatprep.subr.mxu0 0.0
    %251 = vmatpush1.msra.mxu0 0.0
    %252 = vmatprep.subr.mxu0 0.0
    %253 = vmatpush1.msra.mxu0 0.0
    %254 = vmatprep.subr.mxu0 0.0
    %255 = vmatpush1.msra.mxu0 0.0
    %256 = vmatprep.subr.mxu0 0.0
    %257 = vmatpush1.msra.mxu0 0.0
    %258 = vmatprep.subr.mxu0 0.0
    %259 = vmatpush1.msra.mxu0 0.0
    %260 = vmatprep.subr.mxu0 0.0
    %261 = vmatpush1.msra.mxu0 0.0
    %262 = vmatprep.subr.mxu0 0.0
    %263 = vmatpush1.msra.mxu0 0.0
    %264 = vmatprep.subr.mxu0 0.0
    %265 = vmatpush1.msra.mxu0 0.0
    %266 = vmatprep.subr.mxu0 0.0
    %267 = vmatpush1.msra.mxu0 0.0
    %268 = vmatprep.subr.mxu0 0.0
    %269 = vmatpush1.msra.mxu0 0.0
    %270 = vmatprep.subr.mxu0 0.0
    %271 = vmatpush1.msra.mxu0 0.0
    %272 = vmatprep.mubr.f32.mxu0 0.0
    %273 = vmatmul.mubr.f32.gmra.mrb[0].mxu0 %v118
    %v274 = vpop.f32.mrb[0].mxu0
    %v275 = vadd.f32 0.0, %v274
    %v276 = vpop.f32.mrb[0].mxu0
    %v277 = vadd.f32 0.0, %v276
    %278 = vdwg.mxu0
    %279 = vmatprep.subr.mxu0 %v131
    %280 = vmatpush1.msra.mxu0 %v129
    %281 = vmatprep.subr.mxu0 0.0
    %282 = vmatpush1.msra.mxu0 0.0
    %283 = vmatprep.subr.mxu0 0.0
    %284 = vmatpush1.msra.mxu0 0.0
    %285 = vmatprep.subr.mxu0 0.0
    %286 = vmatpush1.msra.mxu0 0.0
    %287 = vmatprep.subr.mxu0 0.0
    %288 = vmatpush1.msra.mxu0 0.0
    %289 = vmatprep.subr.mxu0 0.0
    %290 = vmatpush1.msra.mxu0 0.0
    %291 = vmatprep.subr.mxu0 0.0
    %292 = vmatpush1.msra.mxu0 0.0
    %293 = vmatprep.subr.mxu0 0.0
    %294 = vmatpush1.msra.mxu0 0.0
    %295 = vmatprep.subr.mxu0 0.0
    %296 = vmatpush1.msra.mxu0 0.0
    %297 = vmatprep.subr.mxu0 0.0
    %298 = vmatpush1.msra.mxu0 0.0
    %299 = vmatprep.subr.mxu0 0.0
    %300 = vmatpush1.msra.mxu0 0.0
    %301 = vmatprep.subr.mxu0 0.0
    %302 = vmatpush1.msra.mxu0 0.0
    %303 = vmatprep.subr.mxu0 0.0
    %304 = vmatpush1.msra.mxu0 0.0
    %305 = vmatprep.subr.mxu0 0.0
    %306 = vmatpush1.msra.mxu0 0.0
    %307 = vmatprep.subr.mxu0 0.0
    %308 = vmatpush1.msra.mxu0 0.0
    %309 = vmatprep.subr.mxu0 0.0
    %310 = vmatpush1.msra.mxu0 0.0
    %311 = vmatprep.subr.mxu0 0.0
    %312 = vmatpush1.msra.mxu0 0.0
    %313 = vmatprep.subr.mxu0 0.0
    %314 = vmatpush1.msra.mxu0 0.0
    %315 = vmatprep.subr.mxu0 0.0
    %316 = vmatpush1.msra.mxu0 0.0
    %317 = vmatprep.subr.mxu0 0.0
    %318 = vmatpush1.msra.mxu0 0.0
    %319 = vmatprep.subr.mxu0 0.0
    %320 = vmatpush1.msra.mxu0 0.0
    %321 = vmatprep.subr.mxu0 0.0
    %322 = vmatpush1.msra.mxu0 0.0
    %323 = vmatprep.subr.mxu0 0.0
    %324 = vmatpush1.msra.mxu0 0.0
    %325 = vmatprep.subr.mxu0 0.0
    %326 = vmatpush1.msra.mxu0 0.0
    %327 = vmatprep.subr.mxu0 0.0
    %328 = vmatpush1.msra.mxu0 0.0
    %329 = vmatprep.subr.mxu0 0.0
    %330 = vmatpush1.msra.mxu0 0.0
    %331 = vmatprep.subr.mxu0 0.0
    %332 = vmatpush1.msra.mxu0 0.0
    %333 = vmatprep.subr.mxu0 0.0
    %334 = vmatpush1.msra.mxu0 0.0
    %335 = vmatprep.subr.mxu0 0.0
    %336 = vmatpush1.msra.mxu0 0.0
    %337 = vmatprep.subr.mxu0 0.0
    %338 = vmatpush1.msra.mxu0 0.0
    %339 = vmatprep.subr.mxu0 0.0
    %340 = vmatpush1.msra.mxu0 0.0
    %341 = vmatprep.subr.mxu0 0.0
    %342 = vmatpush1.msra.mxu0 0.0
    %343 = vmatprep.mubr.f32.mxu0 0.0
    %344 = vmatmul.mubr.f32.gmra.mrb[0].mxu0 %v118
    %v345 = vpop.f32.mrb[0].mxu0
    %v346 = vadd.f32 0.0, %v345
    %v347 = vpop.f32.mrb[0].mxu0
    %v348 = vadd.f32 0.0, %v347
    %349 = vdwg.mxu0
    %350 = vmatprep.subr.mxu0 %v135
    %351 = vmatpush1.msra.mxu0 %v133
    %352 = vmatprep.subr.mxu0 0.0
    %353 = vmatpush1.msra.mxu0 0.0
    %354 = vmatprep.subr.mxu0 0.0
    %355 = vmatpush1.msra.mxu0 0.0
    %356 = vmatprep.subr.mxu0 0.0
    %357 = vmatpush1.msra.mxu0 0.0
    %358 = vmatprep.subr.mxu0 0.0
    %359 = vmatpush1.msra.mxu0 0.0
    %360 = vmatprep.subr.mxu0 0.0
    %361 = vmatpush1.msra.mxu0 0.0
    %362 = vmatprep.subr.mxu0 0.0
    %363 = vmatpush1.msra.mxu0 0.0
    %364 = vmatprep.subr.mxu0 0.0
    %365 = vmatpush1.msra.mxu0 0.0
    %366 = vmatprep.subr.mxu0 0.0
    %367 = vmatpush1.msra.mxu0 0.0
    %368 = vmatprep.subr.mxu0 0.0
    %369 = vmatpush1.msra.mxu0 0.0
    %370 = vmatprep.subr.mxu0 0.0
    %371 = vmatpush1.msra.mxu0 0.0
    %372 = vmatprep.subr.mxu0 0.0
    %373 = vmatpush1.msra.mxu0 0.0
    %374 = vmatprep.subr.mxu0 0.0
    %375 = vmatpush1.msra.mxu0 0.0
    %376 = vmatprep.subr.mxu0 0.0
    %377 = vmatpush1.msra.mxu0 0.0
    %378 = vmatprep.subr.mxu0 0.0
    %379 = vmatpush1.msra.mxu0 0.0
    %380 = vmatprep.subr.mxu0 0.0
    %381 = vmatpush1.msra.mxu0 0.0
    %382 = vmatprep.subr.mxu0 0.0
    %383 = vmatpush1.msra.mxu0 0.0
    %384 = vmatprep.subr.mxu0 0.0
    %385 = vmatpush1.msra.mxu0 0.0
    %386 = vmatprep.subr.mxu0 0.0
    %387 = vmatpush1.msra.mxu0 0.0
    %388 = vmatprep.subr.mxu0 0.0
    %389 = vmatpush1.msra.mxu0 0.0
    %390 = vmatprep.subr.mxu0 0.0
    %391 = vmatpush1.msra.mxu0 0.0
    %392 = vmatprep.subr.mxu0 0.0
    %393 = vmatpush1.msra.mxu0 0.0
    %394 = vmatprep.subr.mxu0 0.0
    %395 = vmatpush1.msra.mxu0 0.0
    %396 = vmatprep.subr.mxu0 0.0
    %397 = vmatpush1.msra.mxu0 0.0
    %398 = vmatprep.subr.mxu0 0.0
    %399 = vmatpush1.msra.mxu0 0.0
    %400 = vmatprep.subr.mxu0 0.0
    %401 = vmatpush1.msra.mxu0 0.0
    %402 = vmatprep.subr.mxu0 0.0
    %403 = vmatpush1.msra.mxu0 0.0
    %404 = vmatprep.subr.mxu0 0.0
    %405 = vmatpush1.msra.mxu0 0.0
    %406 = vmatprep.subr.mxu0 0.0
    %407 = vmatpush1.msra.mxu0 0.0
    %408 = vmatprep.subr.mxu0 0.0
    %409 = vmatpush1.msra.mxu0 0.0
    %410 = vmatprep.subr.mxu0 0.0
    %411 = vmatpush1.msra.mxu0 0.0
    %412 = vmatprep.subr.mxu0 0.0
    %413 = vmatpush1.msra.mxu0 0.0
    %414 = vmatprep.mubr.f32.mxu0 0.0
    %415 = vmatmul.mubr.f32.gmra.mrb[0].mxu0 %v118
    %v416 = vpop.f32.mrb[0].mxu0
    %v417 = vadd.f32 0.0, %v416
    %v418 = vpop.f32.mrb[0].mxu0
    %v419 = vadd.f32 0.0, %v418
    %420 = vdwg.mxu0
    %vm421 = vcmask 64512
    %v423 = vsel %vm421, %v94, 0
    %425 = vmatprep.subr.mxu0 %v97
    %426 = vmatpush1.msra.mxu0 %v96
    %427 = vmatprep.subr.mxu0 0.0
    %428 = vmatpush1.msra.mxu0 0.0
    %429 = vmatprep.subr.mxu0 0.0
    %430 = vmatpush1.msra.mxu0 0.0
    %431 = vmatprep.subr.mxu0 0.0
    %432 = vmatpush1.msra.mxu0 0.0
    %433 = vmatprep.subr.mxu0 0.0
    %434 = vmatpush1.msra.mxu0 0.0
    %435 = vmatprep.subr.mxu0 0.0
    %436 = vmatpush1.msra.mxu0 0.0
    %437 = vmatprep.subr.mxu0 0.0
    %438 = vmatpush1.msra.mxu0 0.0
    %439 = vmatprep.subr.mxu0 0.0
    %440 = vmatpush1.msra.mxu0 0.0
    %441 = vmatprep.subr.mxu0 0.0
    %442 = vmatpush1.msra.mxu0 0.0
    %443 = vmatprep.subr.mxu0 0.0
    %444 = vmatpush1.msra.mxu0 0.0
    %445 = vmatprep.subr.mxu0 0.0
    %446 = vmatpush1.msra.mxu0 0.0
    %447 = vmatprep.subr.mxu0 0.0
    %448 = vmatpush1.msra.mxu0 0.0
    %449 = vmatprep.subr.mxu0 0.0
    %450 = vmatpush1.msra.mxu0 0.0
    %451 = vmatprep.subr.mxu0 0.0
    %452 = vmatpush1.msra.mxu0 0.0
    %453 = vmatprep.subr.mxu0 0.0
    %454 = vmatpush1.msra.mxu0 0.0
    %455 = vmatprep.subr.mxu0 0.0
    %456 = vmatpush1.msra.mxu0 0.0
    %457 = vmatprep.subr.mxu0 0.0
    %458 = vmatpush1.msra.mxu0 0.0
    %459 = vmatprep.subr.mxu0 0.0
    %460 = vmatpush1.msra.mxu0 0.0
    %461 = vmatprep.subr.mxu0 0.0
    %462 = vmatpush1.msra.mxu0 0.0
    %463 = vmatprep.subr.mxu0 0.0
    %464 = vmatpush1.msra.mxu0 0.0
    %465 = vmatprep.subr.mxu0 0.0
    %466 = vmatpush1.msra.mxu0 0.0
    %467 = vmatprep.subr.mxu0 0.0
    %468 = vmatpush1.msra.mxu0 0.0
    %469 = vmatprep.subr.mxu0 0.0
    %470 = vmatpush1.msra.mxu0 0.0
    %471 = vmatprep.subr.mxu0 0.0
    %472 = vmatpush1.msra.mxu0 0.0
    %473 = vmatprep.subr.mxu0 0.0
    %474 = vmatpush1.msra.mxu0 0.0
    %475 = vmatprep.subr.mxu0 0.0
    %476 = vmatpush1.msra.mxu0 0.0
    %477 = vmatprep.subr.mxu0 0.0
    %478 = vmatpush1.msra.mxu0 0.0
    %479 = vmatprep.subr.mxu0 0.0
    %480 = vmatpush1.msra.mxu0 0.0
    %481 = vmatprep.subr.mxu0 0.0
    %482 = vmatpush1.msra.mxu0 0.0
    %483 = vmatprep.subr.mxu0 0.0
    %484 = vmatpush1.msra.mxu0 0.0
    %485 = vmatprep.subr.mxu0 0.0
    %486 = vmatpush1.msra.mxu0 0.0
    %487 = vmatprep.subr.mxu0 0.0
    %488 = vmatpush1.msra.mxu0 0.0
    %489 = vmatprep.mubr.f32.mxu0 0.0
    %490 = vmatmul.mubr.f32.gmra.mrb[0].mxu0 %v423
    %v491 = vpop.f32.mrb[0].mxu0
    %v492 = vadd.f32 %v204, %v491
    %v493 = vpop.f32.mrb[0].mxu0
    %v494 = vadd.f32 %v206, %v493
    %495 = vdwg.mxu0
    %496 = vmatprep.subr.mxu0 %v99
    %497 = vmatpush1.msra.mxu0 %v98
    %498 = vmatprep.subr.mxu0 0.0
    %499 = vmatpush1.msra.mxu0 0.0
    %500 = vmatprep.subr.mxu0 0.0
    %501 = vmatpush1.msra.mxu0 0.0
    %502 = vmatprep.subr.mxu0 0.0
    %503 = vmatpush1.msra.mxu0 0.0
    %504 = vmatprep.subr.mxu0 0.0
    %505 = vmatpush1.msra.mxu0 0.0
    %506 = vmatprep.subr.mxu0 0.0
    %507 = vmatpush1.msra.mxu0 0.0
    %508 = vmatprep.subr.mxu0 0.0
    %509 = vmatpush1.msra.mxu0 0.0
    %510 = vmatprep.subr.mxu0 0.0
    %511 = vmatpush1.msra.mxu0 0.0
    %512 = vmatprep.subr.mxu0 0.0
    %513 = vmatpush1.msra.mxu0 0.0
    %514 = vmatprep.subr.mxu0 0.0
    %515 = vmatpush1.msra.mxu0 0.0
    %516 = vmatprep.subr.mxu0 0.0
    %517 = vmatpush1.msra.mxu0 0.0
    %518 = vmatprep.subr.mxu0 0.0
    %519 = vmatpush1.msra.mxu0 0.0
    %520 = vmatprep.subr.mxu0 0.0
    %521 = vmatpush1.msra.mxu0 0.0
    %522 = vmatprep.subr.mxu0 0.0
    %523 = vmatpush1.msra.mxu0 0.0
    %524 = vmatprep.subr.mxu0 0.0
    %525 = vmatpush1.msra.mxu0 0.0
    %526 = vmatprep.subr.mxu0 0.0
    %527 = vmatpush1.msra.mxu0 0.0
    %528 = vmatprep.subr.mxu0 0.0
    %529 = vmatpush1.msra.mxu0 0.0
    %530 = vmatprep.subr.mxu0 0.0
    %531 = vmatpush1.msra.mxu0 0.0
    %532 = vmatprep.subr.mxu0 0.0
    %533 = vmatpush1.msra.mxu0 0.0
    %534 = vmatprep.subr.mxu0 0.0
    %535 = vmatpush1.msra.mxu0 0.0
    %536 = vmatprep.subr.mxu0 0.0
    %537 = vmatpush1.msra.mxu0 0.0
    %538 = vmatprep.subr.mxu0 0.0
    %539 = vmatpush1.msra.mxu0 0.0
    %540 = vmatprep.subr.mxu0 0.0
    %541 = vmatpush1.msra.mxu0 0.0
    %542 = vmatprep.subr.mxu0 0.0
    %543 = vmatpush1.msra.mxu0 0.0
    %544 = vmatprep.subr.mxu0 0.0
    %545 = vmatpush1.msra.mxu0 0.0
    %546 = vmatprep.subr.mxu0 0.0
    %547 = vmatpush1.msra.mxu0 0.0
    %548 = vmatprep.subr.mxu0 0.0
    %549 = vmatpush1.msra.mxu0 0.0
    %550 = vmatprep.subr.mxu0 0.0
    %551 = vmatpush1.msra.mxu0 0.0
    %552 = vmatprep.subr.mxu0 0.0
    %553 = vmatpush1.msra.mxu0 0.0
    %554 = vmatprep.subr.mxu0 0.0
    %555 = vmatpush1.msra.mxu0 0.0
    %556 = vmatprep.subr.mxu0 0.0
    %557 = vmatpush1.msra.mxu0 0.0
    %558 = vmatprep.subr.mxu0 0.0
    %559 = vmatpush1.msra.mxu0 0.0
    %560 = vmatprep.mubr.f32.mxu0 0.0
    %561 = vmatmul.mubr.f32.gmra.mrb[0].mxu0 %v423
    %v562 = vpop.f32.mrb[0].mxu0
    %v563 = vadd.f32 %v275, %v562
    %v564 = vpop.f32.mrb[0].mxu0
    %v565 = vadd.f32 %v277, %v564
    %566 = vdwg.mxu0
    %567 = vmatprep.subr.mxu0 %v101
    %568 = vmatpush1.msra.mxu0 %v100
    %569 = vmatprep.subr.mxu0 0.0
    %570 = vmatpush1.msra.mxu0 0.0
    %571 = vmatprep.subr.mxu0 0.0
    %572 = vmatpush1.msra.mxu0 0.0
    %573 = vmatprep.subr.mxu0 0.0
    %574 = vmatpush1.msra.mxu0 0.0
    %575 = vmatprep.subr.mxu0 0.0
    %576 = vmatpush1.msra.mxu0 0.0
    %577 = vmatprep.subr.mxu0 0.0
    %578 = vmatpush1.msra.mxu0 0.0
    %579 = vmatprep.subr.mxu0 0.0
    %580 = vmatpush1.msra.mxu0 0.0
    %581 = vmatprep.subr.mxu0 0.0
    %582 = vmatpush1.msra.mxu0 0.0
    %583 = vmatprep.subr.mxu0 0.0
    %584 = vmatpush1.msra.mxu0 0.0
    %585 = vmatprep.subr.mxu0 0.0
    %586 = vmatpush1.msra.mxu0 0.0
    %587 = vmatprep.subr.mxu0 0.0
    %588 = vmatpush1.msra.mxu0 0.0
    %589 = vmatprep.subr.mxu0 0.0
    %590 = vmatpush1.msra.mxu0 0.0
    %591 = vmatprep.subr.mxu0 0.0
    %592 = vmatpush1.msra.mxu0 0.0
    %593 = vmatprep.subr.mxu0 0.0
    %594 = vmatpush1.msra.mxu0 0.0
    %595 = vmatprep.subr.mxu0 0.0
    %596 = vmatpush1.msra.mxu0 0.0
    %597 = vmatprep.subr.mxu0 0.0
    %598 = vmatpush1.msra.mxu0 0.0
    %599 = vmatprep.subr.mxu0 0.0
    %600 = vmatpush1.msra.mxu0 0.0
    %601 = vmatprep.subr.mxu0 0.0
    %602 = vmatpush1.msra.mxu0 0.0
    %603 = vmatprep.subr.mxu0 0.0
    %604 = vmatpush1.msra.mxu0 0.0
    %605 = vmatprep.subr.mxu0 0.0
    %606 = vmatpush1.msra.mxu0 0.0
    %607 = vmatprep.subr.mxu0 0.0
    %608 = vmatpush1.msra.mxu0 0.0
    %609 = vmatprep.subr.mxu0 0.0
    %610 = vmatpush1.msra.mxu0 0.0
    %611 = vmatprep.subr.mxu0 0.0
    %612 = vmatpush1.msra.mxu0 0.0
    %613 = vmatprep.subr.mxu0 0.0
    %614 = vmatpush1.msra.mxu0 0.0
    %615 = vmatprep.subr.mxu0 0.0
    %616 = vmatpush1.msra.mxu0 0.0
    %617 = vmatprep.subr.mxu0 0.0
    %618 = vmatpush1.msra.mxu0 0.0
    %619 = vmatprep.subr.mxu0 0.0
    %620 = vmatpush1.msra.mxu0 0.0
    %621 = vmatprep.subr.mxu0 0.0
    %622 = vmatpush1.msra.mxu0 0.0
    %623 = vmatprep.subr.mxu0 0.0
    %624 = vmatpush1.msra.mxu0 0.0
    %625 = vmatprep.subr.mxu0 0.0
    %626 = vmatpush1.msra.mxu0 0.0
    %627 = vmatprep.subr.mxu0 0.0
    %628 = vmatpush1.msra.mxu0 0.0
    %629 = vmatprep.subr.mxu0 0.0
    %630 = vmatpush1.msra.mxu0 0.0
    %631 = vmatprep.mubr.f32.mxu0 0.0
    %632 = vmatmul.mubr.f32.gmra.mrb[0].mxu0 %v423
    %v633 = vpop.f32.mrb[0].mxu0
    %v634 = vadd.f32 %v346, %v633
    %v635 = vpop.f32.mrb[0].mxu0
    %v636 = vadd.f32 %v348, %v635
    %637 = vdwg.mxu0
    %638 = vmatprep.subr.mxu0 %v103
    %639 = vmatpush1.msra.mxu0 %v102
    %640 = vmatprep.subr.mxu0 0.0
    %641 = vmatpush1.msra.mxu0 0.0
    %642 = vmatprep.subr.mxu0 0.0
    %643 = vmatpush1.msra.mxu0 0.0
    %644 = vmatprep.subr.mxu0 0.0
    %645 = vmatpush1.msra.mxu0 0.0
    %646 = vmatprep.subr.mxu0 0.0
    %647 = vmatpush1.msra.mxu0 0.0
    %648 = vmatprep.subr.mxu0 0.0
    %649 = vmatpush1.msra.mxu0 0.0
    %650 = vmatprep.subr.mxu0 0.0
    %651 = vmatpush1.msra.mxu0 0.0
    %652 = vmatprep.subr.mxu0 0.0
    %653 = vmatpush1.msra.mxu0 0.0
    %654 = vmatprep.subr.mxu0 0.0
    %655 = vmatpush1.msra.mxu0 0.0
    %656 = vmatprep.subr.mxu0 0.0
    %657 = vmatpush1.msra.mxu0 0.0
    %658 = vmatprep.subr.mxu0 0.0
    %659 = vmatpush1.msra.mxu0 0.0
    %660 = vmatprep.subr.mxu0 0.0
    %661 = vmatpush1.msra.mxu0 0.0
    %662 = vmatprep.subr.mxu0 0.0
    %663 = vmatpush1.msra.mxu0 0.0
    %664 = vmatprep.subr.mxu0 0.0
    %665 = vmatpush1.msra.mxu0 0.0
    %666 = vmatprep.subr.mxu0 0.0
    %667 = vmatpush1.msra.mxu0 0.0
    %668 = vmatprep.subr.mxu0 0.0
    %669 = vmatpush1.msra.mxu0 0.0
    %670 = vmatprep.subr.mxu0 0.0
    %671 = vmatpush1.msra.mxu0 0.0
    %672 = vmatprep.subr.mxu0 0.0
    %673 = vmatpush1.msra.mxu0 0.0
    %674 = vmatprep.subr.mxu0 0.0
    %675 = vmatpush1.msra.mxu0 0.0
    %676 = vmatprep.subr.mxu0 0.0
    %677 = vmatpush1.msra.mxu0 0.0
    %678 = vmatprep.subr.mxu0 0.0
    %679 = vmatpush1.msra.mxu0 0.0
    %680 = vmatprep.subr.mxu0 0.0
    %681 = vmatpush1.msra.mxu0 0.0
    %682 = vmatprep.subr.mxu0 0.0
    %683 = vmatpush1.msra.mxu0 0.0
    %684 = vmatprep.subr.mxu0 0.0
    %685 = vmatpush1.msra.mxu0 0.0
    %686 = vmatprep.subr.mxu0 0.0
    %687 = vmatpush1.msra.mxu0 0.0
    %688 = vmatprep.subr.mxu0 0.0
    %689 = vmatpush1.msra.mxu0 0.0
    %690 = vmatprep.subr.mxu0 0.0
    %691 = vmatpush1.msra.mxu0 0.0
    %692 = vmatprep.subr.mxu0 0.0
    %693 = vmatpush1.msra.mxu0 0.0
    %694 = vmatprep.subr.mxu0 0.0
    %695 = vmatpush1.msra.mxu0 0.0
    %696 = vmatprep.subr.mxu0 0.0
    %697 = vmatpush1.msra.mxu0 0.0
    %698 = vmatprep.subr.mxu0 0.0
    %699 = vmatpush1.msra.mxu0 0.0
    %700 = vmatprep.subr.mxu0 0.0
    %701 = vmatpush1.msra.mxu0 0.0
    %702 = vmatprep.mubr.f32.mxu0 0.0
    %703 = vmatmul.mubr.f32.gmra.mrb[0].mxu0 %v423
    %v704 = vpop.f32.mrb[0].mxu0
    %v705 = vadd.f32 %v417, %v704
    %v706 = vpop.f32.mrb[0].mxu0
    %v707 = vadd.f32 %v419, %v706
    %708 = vdwg.mxu0
    %v709 = vld [vmem:[%s7] sm:$0xff]
    %v711 = vlaneseq
    %v712 = vshrl.u32 %v711, 7
    %v713 = vsub.s32 0, %v712
    %v714 = vrot.slane %v709, %v713
    %v715 = vlaneseq
    %v716 = vshrl.u32 %v715, 7
    %v717 = vsub.s32 1, %v716
    %v718 = vrot.slane %v709, %v717
    %v719 = vlaneseq
    %v720 = vshrl.u32 %v719, 7
    %v721 = vsub.s32 2, %v720
    %v722 = vrot.slane %v709, %v721
    %v723 = vlaneseq
    %v724 = vshrl.u32 %v723, 7
    %v725 = vsub.s32 3, %v724
    %v726 = vrot.slane %v709, %v725
    %v727 = vlaneseq
    %v728 = vshrl.u32 %v727, 7
    %v729 = vsub.s32 4, %v728
    %v730 = vrot.slane %v709, %v729
    %v731 = vlaneseq
    %v732 = vshrl.u32 %v731, 7
    %v733 = vsub.s32 5, %v732
    %v734 = vrot.slane %v709, %v733
    %v735 = vlaneseq
    %v736 = vshrl.u32 %v735, 7
    %v737 = vsub.s32 6, %v736
    %v738 = vrot.slane %v709, %v737
    %v739 = vlaneseq
    %v740 = vshrl.u32 %v739, 7
    %v741 = vsub.s32 7, %v740
    %v742 = vrot.slane %v709, %v741
    %v751 = vadd.f32 %v492, %v714
    %v752 = vadd.f32 %v494, %v718
    %v753 = vadd.f32 %v563, %v722
    %v754 = vadd.f32 %v565, %v726
    %v755 = vadd.f32 %v634, %v730
    %v756 = vadd.f32 %v636, %v734
    %v757 = vadd.f32 %v705, %v738
    %v758 = vadd.f32 %v707, %v742
    %v759 = vmax.f32 %v751, 0.0
    %v760 = vmax.f32 %v752, 0.0
    %v761 = vmax.f32 %v753, 0.0
    %v762 = vmax.f32 %v754, 0.0
    %v763 = vmax.f32 %v755, 0.0
    %v764 = vmax.f32 %v756, 0.0
    %v765 = vmax.f32 %v757, 0.0
    %v766 = vmax.f32 %v758, 0.0
    %v767 = vld [vmem:[#allocation7] sm:$0xff]
    %v768 = vld [vmem:[#allocation7 + $0x8] sm:$0xff]
    %v769 = vld [vmem:[#allocation7 + $0x10] sm:$0xff]
    %v770 = vld [vmem:[#allocation7 + $0x18] sm:$0xff]
    %v771 = vld [vmem:[#allocation7 + $0x20] sm:$0xff]
    %v772 = vld [vmem:[#allocation7 + $0x28] sm:$0xff]
    %v773 = vld [vmem:[#allocation7 + $0x30] sm:$0xff]
    %v774 = vld [vmem:[#allocation7 + $0x38] sm:$0xff]
    %v775 = vld [vmem:[#allocation7 + $0x40] sm:$0xff]
    %v776 = vld [vmem:[#allocation7 + $0x48] sm:$0xff]
    %v777 = vld [vmem:[#allocation7 + $0x50] sm:$0xff]
    %v778 = vld [vmem:[#allocation7 + $0x58] sm:$0xff]
    %v779 = vld [vmem:[#allocation7 + $0x60] sm:$0xff]
    %v780 = vld [vmem:[#allocation7 + $0x68] sm:$0xff]
    %v781 = vld [vmem:[#allocation7 + $0x70] sm:$0xff]
    %v782 = vld [vmem:[#allocation7 + $0x78] sm:$0xff]
    %v783 = vld [vmem:[#allocation7 + $0x80] sm:$0xff]
    %v784 = vld [vmem:[#allocation7 + $0x88] sm:$0xff]
    %v785 = vld [vmem:[#allocation7 + $0x90] sm:$0xff]
    %v786 = vld [vmem:[#allocation7 + $0x98] sm:$0xff]
    %v787 = vld [vmem:[#allocation7 + $0xa0] sm:$0xff]
    %v788 = vld [vmem:[#allocation7 + $0xa8] sm:$0xff]
    %v789 = vld [vmem:[#allocation7 + $0xb0] sm:$0xff]
    %v790 = vld [vmem:[#allocation7 + $0xb8] sm:$0xff]
    %v791 = vld [vmem:[#allocation7 + $0xc0] sm:$0xff]
    %v792 = vld [vmem:[#allocation7 + $0xc8] sm:$0xff]
    %v793 = vld [vmem:[#allocation7 + $0xd0] sm:$0xff]
    %v794 = vld [vmem:[#allocation7 + $0xd8] sm:$0xff]
    %v795 = vld [vmem:[#allocation7 + $0xe0] sm:$0xff]
    %v796 = vld [vmem:[#allocation7 + $0xe8] sm:$0xff]
    %v797 = vld [vmem:[#allocation7 + $0xf0] sm:$0xff]
    %v798 = vld [vmem:[#allocation7 + $0xf8] sm:$0xff]
    %v799 = vld [vmem:[#allocation7 + $0x100] sm:$0xff]
    %v800 = vld [vmem:[#allocation7 + $0x108] sm:$0xff]
    %v801 = vld [vmem:[#allocation7 + $0x110] sm:$0xff]
    %v802 = vld [vmem:[#allocation7 + $0x118] sm:$0xff]
    %v803 = vld [vmem:[#allocation7 + $0x120] sm:$0xff]
    %v804 = vld [vmem:[#allocation7 + $0x128] sm:$0xff]
    %v805 = vld [vmem:[#allocation7 + $0x130] sm:$0xff]
    %v806 = vld [vmem:[#allocation7 + $0x138] sm:$0xff]
    %v807 = vld [vmem:[#allocation7 + $0x140] sm:$0xff]
    %v808 = vld [vmem:[#allocation7 + $0x148] sm:$0xff]
    %v809 = vld [vmem:[#allocation7 + $0x150] sm:$0xff]
    %v810 = vld [vmem:[#allocation7 + $0x158] sm:$0xff]
    %v811 = vld [vmem:[#allocation7 + $0x160] sm:$0xff]
    %v812 = vld [vmem:[#allocation7 + $0x168] sm:$0xff]
    %v813 = vld [vmem:[#allocation7 + $0x170] sm:$0xff]
    %v814 = vld [vmem:[#allocation7 + $0x178] sm:$0xff]
    %v815 = vld [vmem:[#allocation7 + $0x180] sm:$0xff]
    %v816 = vld [vmem:[#allocation7 + $0x188] sm:$0xff]
    %v817 = vld [vmem:[#allocation7 + $0x190] sm:$0xff]
    %v818 = vld [vmem:[#allocation7 + $0x198] sm:$0xff]
    %v819 = vld [vmem:[#allocation7 + $0x1a0] sm:$0xff]
    %v820 = vld [vmem:[#allocation7 + $0x1a8] sm:$0xff]
    %v821 = vld [vmem:[#allocation7 + $0x1b0] sm:$0xff]
    %v822 = vld [vmem:[#allocation7 + $0x1b8] sm:$0xff]
    %v823 = vld [vmem:[#allocation7 + $0x1c0] sm:$0xff]
    %v824 = vld [vmem:[#allocation7 + $0x1c8] sm:$0xff]
    %v825 = vld [vmem:[#allocation7 + $0x1d0] sm:$0xff]
    %v826 = vld [vmem:[#allocation7 + $0x1d8] sm:$0xff]
    %v827 = vld [vmem:[#allocation7 + $0x1e0] sm:$0xff]
    %v828 = vld [vmem:[#allocation7 + $0x1e8] sm:$0xff]
    %v829 = vld [vmem:[#allocation7 + $0x1f0] sm:$0xff]
    %v830 = vld [vmem:[#allocation7 + $0x1f8] sm:$0xff]
    %v831 = vld [vmem:[#allocation7 + $0x200] sm:$0xff]
    %v832 = vld [vmem:[#allocation7 + $0x208] sm:$0xff]
    %v833 = vld [vmem:[#allocation7 + $0x210] sm:$0xff]
    %v834 = vld [vmem:[#allocation7 + $0x218] sm:$0xff]
    %v835 = vld [vmem:[#allocation7 + $0x220] sm:$0xff]
    %v836 = vld [vmem:[#allocation7 + $0x228] sm:$0xff]
    %v837 = vld [vmem:[#allocation7 + $0x230] sm:$0xff]
    %v838 = vld [vmem:[#allocation7 + $0x238] sm:$0xff]
    %v839 = vld [vmem:[#allocation7 + $0x240] sm:$0xff]
    %v840 = vld [vmem:[#allocation7 + $0x248] sm:$0xff]
    %v841 = vld [vmem:[#allocation7 + $0x250] sm:$0xff]
    %v842 = vld [vmem:[#allocation7 + $0x258] sm:$0xff]
    %v843 = vld [vmem:[#allocation7 + $0x260] sm:$0xff]
    %v844 = vld [vmem:[#allocation7 + $0x268] sm:$0xff]
    %v845 = vld [vmem:[#allocation7 + $0x270] sm:$0xff]
    %v846 = vld [vmem:[#allocation7 + $0x278] sm:$0xff]
    %v847 = vld [vmem:[#allocation7 + $0x280] sm:$0xff]
    %v848 = vld [vmem:[#allocation7 + $0x288] sm:$0xff]
    %v849 = vld [vmem:[#allocation7 + $0x290] sm:$0xff]
    %v850 = vld [vmem:[#allocation7 + $0x298] sm:$0xff]
    %v851 = vld [vmem:[#allocation7 + $0x2a0] sm:$0xff]
    %v852 = vld [vmem:[#allocation7 + $0x2a8] sm:$0xff]
    %v853 = vld [vmem:[#allocation7 + $0x2b0] sm:$0xff]
    %v854 = vld [vmem:[#allocation7 + $0x2b8] sm:$0xff]
    %v855 = vld [vmem:[#allocation7 + $0x2c0] sm:$0xff]
    %v856 = vld [vmem:[#allocation7 + $0x2c8] sm:$0xff]
    %v857 = vld [vmem:[#allocation7 + $0x2d0] sm:$0xff]
    %v858 = vld [vmem:[#allocation7 + $0x2d8] sm:$0xff]
    %v859 = vld [vmem:[#allocation7 + $0x2e0] sm:$0xff]
    %v860 = vld [vmem:[#allocation7 + $0x2e8] sm:$0xff]
    %v861 = vld [vmem:[#allocation7 + $0x2f0] sm:$0xff]
    %v862 = vld [vmem:[#allocation7 + $0x2f8] sm:$0xff]
    %v863 = vld [vmem:[#allocation7 + $0x300] sm:$0xff]
    %v864 = vld [vmem:[#allocation7 + $0x308] sm:$0xff]
    %v865 = vld [vmem:[#allocation7 + $0x310] sm:$0xff]
    %v866 = vld [vmem:[#allocation7 + $0x318] sm:$0xff]
    %v867 = vld [vmem:[#allocation7 + $0x320] sm:$0xff]
    %v868 = vld [vmem:[#allocation7 + $0x328] sm:$0xff]
    %v869 = vld [vmem:[#allocation7 + $0x330] sm:$0xff]
    %v870 = vld [vmem:[#allocation7 + $0x338] sm:$0xff]
    %v871 = vld [vmem:[#allocation7 + $0x340] sm:$0xff]
    %v872 = vld [vmem:[#allocation7 + $0x348] sm:$0xff]
    %v873 = vld [vmem:[#allocation7 + $0x350] sm:$0xff]
    %v874 = vld [vmem:[#allocation7 + $0x358] sm:$0xff]
    %v875 = vld [vmem:[#allocation7 + $0x360] sm:$0xff]
    %v876 = vld [vmem:[#allocation7 + $0x368] sm:$0xff]
    %v877 = vld [vmem:[#allocation7 + $0x370] sm:$0xff]
    %v878 = vld [vmem:[#allocation7 + $0x378] sm:$0xff]
    %v879 = vld [vmem:[#allocation7 + $0x380] sm:$0xff]
    %v880 = vld [vmem:[#allocation7 + $0x388] sm:$0xff]
    %v881 = vld [vmem:[#allocation7 + $0x390] sm:$0xff]
    %v882 = vld [vmem:[#allocation7 + $0x398] sm:$0xff]
    %v883 = vld [vmem:[#allocation7 + $0x3a0] sm:$0xff]
    %v884 = vld [vmem:[#allocation7 + $0x3a8] sm:$0xff]
    %v885 = vld [vmem:[#allocation7 + $0x3b0] sm:$0xff]
    %v886 = vld [vmem:[#allocation7 + $0x3b8] sm:$0xff]
    %v887 = vld [vmem:[#allocation7 + $0x3c0] sm:$0xff]
    %v888 = vld [vmem:[#allocation7 + $0x3c8] sm:$0xff]
    %v889 = vld [vmem:[#allocation7 + $0x3d0] sm:$0xff]
    %v890 = vld [vmem:[#allocation7 + $0x3d8] sm:$0xff]
    %v891 = vld [vmem:[#allocation7 + $0x3e0] sm:$0xff]
    %v892 = vld [vmem:[#allocation7 + $0x3e8] sm:$0xff]
    %v893 = vld [vmem:[#allocation7 + $0x3f0] sm:$0xff]
    %v894 = vld [vmem:[#allocation7 + $0x3f8] sm:$0xff]
    %v895 = vld [vmem:[#allocation7 + $0x400] sm:$0xff]
    %v896 = vld [vmem:[#allocation7 + $0x408] sm:$0xff]
    %v897 = vld [vmem:[#allocation7 + $0x410] sm:$0xff]
    %v898 = vld [vmem:[#allocation7 + $0x418] sm:$0xff]
    %v899 = vld [vmem:[#allocation7 + $0x420] sm:$0xff]
    %v900 = vld [vmem:[#allocation7 + $0x428] sm:$0xff]
    %v901 = vld [vmem:[#allocation7 + $0x430] sm:$0xff]
    %v902 = vld [vmem:[#allocation7 + $0x438] sm:$0xff]
    %v903 = vld [vmem:[#allocation7 + $0x440] sm:$0xff]
    %v904 = vld [vmem:[#allocation7 + $0x448] sm:$0xff]
    %v905 = vld [vmem:[#allocation7 + $0x450] sm:$0xff]
    %v906 = vld [vmem:[#allocation7 + $0x458] sm:$0xff]
    %v907 = vld [vmem:[#allocation7 + $0x460] sm:$0xff]
    %v908 = vld [vmem:[#allocation7 + $0x468] sm:$0xff]
    %v909 = vld [vmem:[#allocation7 + $0x470] sm:$0xff]
    %v910 = vld [vmem:[#allocation7 + $0x478] sm:$0xff]
    %v911 = vld [vmem:[#allocation7 + $0x480] sm:$0xff]
    %v912 = vld [vmem:[#allocation7 + $0x488] sm:$0xff]
    %v913 = vld [vmem:[#allocation7 + $0x490] sm:$0xff]
    %v914 = vld [vmem:[#allocation7 + $0x498] sm:$0xff]
    %v915 = vld [vmem:[#allocation7 + $0x4a0] sm:$0xff]
    %v916 = vld [vmem:[#allocation7 + $0x4a8] sm:$0xff]
    %v917 = vld [vmem:[#allocation7 + $0x4b0] sm:$0xff]
    %v918 = vld [vmem:[#allocation7 + $0x4b8] sm:$0xff]
    %v919 = vld [vmem:[#allocation7 + $0x4c0] sm:$0xff]
    %v920 = vld [vmem:[#allocation7 + $0x4c8] sm:$0xff]
    %v921 = vld [vmem:[#allocation7 + $0x4d0] sm:$0xff]
    %v922 = vld [vmem:[#allocation7 + $0x4d8] sm:$0xff]
    %v923 = vld [vmem:[#allocation7 + $0x4e0] sm:$0xff]
    %v924 = vld [vmem:[#allocation7 + $0x4e8] sm:$0xff]
    %v925 = vld [vmem:[#allocation7 + $0x4f0] sm:$0xff]
    %v926 = vld [vmem:[#allocation7 + $0x4f8] sm:$0xff]
    %v927 = vld [vmem:[#allocation7 + $0x500] sm:$0xff]
    %v928 = vld [vmem:[#allocation7 + $0x508] sm:$0xff]
    %v929 = vld [vmem:[#allocation7 + $0x510] sm:$0xff]
    %v930 = vld [vmem:[#allocation7 + $0x518] sm:$0xff]
    %v931 = vld [vmem:[#allocation7 + $0x520] sm:$0xff]
    %v932 = vld [vmem:[#allocation7 + $0x528] sm:$0xff]
    %v933 = vld [vmem:[#allocation7 + $0x530] sm:$0xff]
    %v934 = vld [vmem:[#allocation7 + $0x538] sm:$0xff]
    %v935 = vld [vmem:[#allocation7 + $0x540] sm:$0xff]
    %v936 = vld [vmem:[#allocation7 + $0x548] sm:$0xff]
    %v937 = vld [vmem:[#allocation7 + $0x550] sm:$0xff]
    %v938 = vld [vmem:[#allocation7 + $0x558] sm:$0xff]
    %v939 = vld [vmem:[#allocation7 + $0x560] sm:$0xff]
    %v940 = vld [vmem:[#allocation7 + $0x568] sm:$0xff]
    %v941 = vld [vmem:[#allocation7 + $0x570] sm:$0xff]
    %v942 = vld [vmem:[#allocation7 + $0x578] sm:$0xff]
    %v943 = vld [vmem:[#allocation7 + $0x580] sm:$0xff]
    %v944 = vld [vmem:[#allocation7 + $0x588] sm:$0xff]
    %v945 = vld [vmem:[#allocation7 + $0x590] sm:$0xff]
    %v946 = vld [vmem:[#allocation7 + $0x598] sm:$0xff]
    %v947 = vld [vmem:[#allocation7 + $0x5a0] sm:$0xff]
    %v948 = vld [vmem:[#allocation7 + $0x5a8] sm:$0xff]
    %v949 = vld [vmem:[#allocation7 + $0x5b0] sm:$0xff]
    %v950 = vld [vmem:[#allocation7 + $0x5b8] sm:$0xff]
    %v951 = vld [vmem:[#allocation7 + $0x5c0] sm:$0xff]
    %v952 = vld [vmem:[#allocation7 + $0x5c8] sm:$0xff]
    %v953 = vld [vmem:[#allocation7 + $0x5d0] sm:$0xff]
    %v954 = vld [vmem:[#allocation7 + $0x5d8] sm:$0xff]
    %v955 = vld [vmem:[#allocation7 + $0x5e0] sm:$0xff]
    %v956 = vld [vmem:[#allocation7 + $0x5e8] sm:$0xff]
    %v957 = vld [vmem:[#allocation7 + $0x5f0] sm:$0xff]
    %v958 = vld [vmem:[#allocation7 + $0x5f8] sm:$0xff]
    %v959 = vld [vmem:[%s7 + $0x8] sm:$0x7]
    %v961 = vlaneseq
    %v962 = vshrl.u32 %v961, 7
    %v963 = vsub.s32 0, %v962
    %v964 = vrot.slane %v959, %v963
    %v965 = vlaneseq
    %v966 = vshrl.u32 %v965, 7
    %v967 = vsub.s32 1, %v966
    %v968 = vrot.slane %v959, %v967
    %v969 = vlaneseq
    %v970 = vshrl.u32 %v969, 7
    %v971 = vsub.s32 2, %v970
    %v972 = vrot.slane %v959, %v971
    %976 = vmatprep.subr.mxu0 %v768
    %977 = vmatpush1.msra.mxu0 %v767
    %978 = vmatprep.subr.mxu0 %v771
    %979 = vmatpush1.msra.mxu0 %v770
    %980 = vmatprep.subr.mxu0 %v774
    %981 = vmatpush1.msra.mxu0 %v773
    %982 = vmatprep.subr.mxu0 %v777
    %983 = vmatpush1.msra.mxu0 %v776
    %984 = vmatprep.subr.mxu0 %v780
    %985 = vmatpush1.msra.mxu0 %v779
    %986 = vmatprep.subr.mxu0 %v783
    %987 = vmatpush1.msra.mxu0 %v782
    %988 = vmatprep.subr.mxu0 %v786
    %989 = vmatpush1.msra.mxu0 %v785
    %990 = vmatprep.subr.mxu0 %v789
    %991 = vmatpush1.msra.mxu0 %v788
    %992 = vmatprep.subr.mxu0 %v792
    %993 = vmatpush1.msra.mxu0 %v791
    %994 = vmatprep.subr.mxu0 %v795
    %995 = vmatpush1.msra.mxu0 %v794
    %996 = vmatprep.subr.mxu0 %v798
    %997 = vmatpush1.msra.mxu0 %v797
    %998 = vmatprep.subr.mxu0 %v801
    %999 = vmatpush1.msra.mxu0 %v800
    %1000 = vmatprep.subr.mxu0 %v804
    %1001 = vmatpush1.msra.mxu0 %v803
    %1002 = vmatprep.subr.mxu0 %v807
    %1003 = vmatpush1.msra.mxu0 %v806
    %1004 = vmatprep.subr.mxu0 %v810
    %1005 = vmatpush1.msra.mxu0 %v809
    %1006 = vmatprep.subr.mxu0 %v813
    %1007 = vmatpush1.msra.mxu0 %v812
    %1008 = vmatprep.subr.mxu0 %v816
    %1009 = vmatpush1.msra.mxu0 %v815
    %1010 = vmatprep.subr.mxu0 %v819
    %1011 = vmatpush1.msra.mxu0 %v818
    %1012 = vmatprep.subr.mxu0 %v822
    %1013 = vmatpush1.msra.mxu0 %v821
    %1014 = vmatprep.subr.mxu0 %v825
    %1015 = vmatpush1.msra.mxu0 %v824
    %1016 = vmatprep.subr.mxu0 %v828
    %1017 = vmatpush1.msra.mxu0 %v827
    %1018 = vmatprep.subr.mxu0 %v831
    %1019 = vmatpush1.msra.mxu0 %v830
    %1020 = vmatprep.subr.mxu0 %v834
    %1021 = vmatpush1.msra.mxu0 %v833
    %1022 = vmatprep.subr.mxu0 %v837
    %1023 = vmatpush1.msra.mxu0 %v836
    %1024 = vmatprep.subr.mxu0 %v840
    %1025 = vmatpush1.msra.mxu0 %v839
    %1026 = vmatprep.subr.mxu0 %v843
    %1027 = vmatpush1.msra.mxu0 %v842
    %1028 = vmatprep.subr.mxu0 %v846
    %1029 = vmatpush1.msra.mxu0 %v845
    %1030 = vmatprep.subr.mxu0 %v849
    %1031 = vmatpush1.msra.mxu0 %v848
    %1032 = vmatprep.subr.mxu0 %v852
    %1033 = vmatpush1.msra.mxu0 %v851
    %1034 = vmatprep.subr.mxu0 %v855
    %1035 = vmatpush1.msra.mxu0 %v854
    %1036 = vmatprep.subr.mxu0 %v858
    %1037 = vmatpush1.msra.mxu0 %v857
    %1038 = vmatprep.subr.mxu0 %v861
    %1039 = vmatpush1.msra.mxu0 %v860
    %1040 = vmatprep.mubr.f32.mxu0 %v760
    %1041 = vmatmul.mubr.f32.gmra.mrb[0].mxu0 %v759
    %v1042 = vpop.f32.mrb[0].mxu0
    %v1043 = vadd.f32 %v964, %v1042
    %v1044 = vpop.f32.mrb[0].mxu0
    %v1045 = vadd.f32 %v968, %v1044
    %1046 = vdwg.mxu0
    %1047 = vmatprep.subr.mxu0 %v864
    %1048 = vmatpush1.msra.mxu0 %v863
    %1049 = vmatprep.subr.mxu0 %v867
    %1050 = vmatpush1.msra.mxu0 %v866
    %1051 = vmatprep.subr.mxu0 %v870
    %1052 = vmatpush1.msra.mxu0 %v869
    %1053 = vmatprep.subr.mxu0 %v873
    %1054 = vmatpush1.msra.mxu0 %v872
    %1055 = vmatprep.subr.mxu0 %v876
    %1056 = vmatpush1.msra.mxu0 %v875
    %1057 = vmatprep.subr.mxu0 %v879
    %1058 = vmatpush1.msra.mxu0 %v878
    %1059 = vmatprep.subr.mxu0 %v882
    %1060 = vmatpush1.msra.mxu0 %v881
    %1061 = vmatprep.subr.mxu0 %v885
    %1062 = vmatpush1.msra.mxu0 %v884
    %1063 = vmatprep.subr.mxu0 %v888
    %1064 = vmatpush1.msra.mxu0 %v887
    %1065 = vmatprep.subr.mxu0 %v891
    %1066 = vmatpush1.msra.mxu0 %v890
    %1067 = vmatprep.subr.mxu0 %v894
    %1068 = vmatpush1.msra.mxu0 %v893
    %1069 = vmatprep.subr.mxu0 %v897
    %1070 = vmatpush1.msra.mxu0 %v896
    %1071 = vmatprep.subr.mxu0 %v900
    %1072 = vmatpush1.msra.mxu0 %v899
    %1073 = vmatprep.subr.mxu0 %v903
    %1074 = vmatpush1.msra.mxu0 %v902
    %1075 = vmatprep.subr.mxu0 %v906
    %1076 = vmatpush1.msra.mxu0 %v905
    %1077 = vmatprep.subr.mxu0 %v909
    %1078 = vmatpush1.msra.mxu0 %v908
    %1079 = vmatprep.subr.mxu0 %v912
    %1080 = vmatpush1.msra.mxu0 %v911
    %1081 = vmatprep.subr.mxu0 %v915
    %1082 = vmatpush1.msra.mxu0 %v914
    %1083 = vmatprep.subr.mxu0 %v918
    %1084 = vmatpush1.msra.mxu0 %v917
    %1085 = vmatprep.subr.mxu0 %v921
    %1086 = vmatpush1.msra.mxu0 %v920
    %1087 = vmatprep.subr.mxu0 %v924
    %1088 = vmatpush1.msra.mxu0 %v923
    %1089 = vmatprep.subr.mxu0 %v927
    %1090 = vmatpush1.msra.mxu0 %v926
    %1091 = vmatprep.subr.mxu0 %v930
    %1092 = vmatpush1.msra.mxu0 %v929
    %1093 = vmatprep.subr.mxu0 %v933
    %1094 = vmatpush1.msra.mxu0 %v932
    %1095 = vmatprep.subr.mxu0 %v936
    %1096 = vmatpush1.msra.mxu0 %v935
    %1097 = vmatprep.subr.mxu0 %v939
    %1098 = vmatpush1.msra.mxu0 %v938
    %1099 = vmatprep.subr.mxu0 %v942
    %1100 = vmatpush1.msra.mxu0 %v941
    %1101 = vmatprep.subr.mxu0 %v945
    %1102 = vmatpush1.msra.mxu0 %v944
    %1103 = vmatprep.subr.mxu0 %v948
    %1104 = vmatpush1.msra.mxu0 %v947
    %1105 = vmatprep.subr.mxu0 %v951
    %1106 = vmatpush1.msra.mxu0 %v950
    %1107 = vmatprep.subr.mxu0 %v954
    %1108 = vmatpush1.msra.mxu0 %v953
    %1109 = vmatprep.subr.mxu0 %v957
    %1110 = vmatpush1.msra.mxu0 %v956
    %1111 = vmatprep.mubr.f32.mxu0 %v762
    %1112 = vmatmul.mubr.f32.gmra.mrb[0].mxu0 %v761
    %v1113 = vpop.f32.mrb[0].mxu0
    %v1114 = vadd.f32 %v1043, %v1113
    %v1115 = vpop.f32.mrb[0].mxu0
    %v1116 = vadd.f32 %v1045, %v1115
    %1117 = vdwg.mxu0
    %1118 = vmatprep.subr.mxu0 0.0
    %1119 = vmatpush1.msra.mxu0 %v769
    %1120 = vmatprep.subr.mxu0 0.0
    %1121 = vmatpush1.msra.mxu0 %v772
    %1122 = vmatprep.subr.mxu0 0.0
    %1123 = vmatpush1.msra.mxu0 %v775
    %1124 = vmatprep.subr.mxu0 0.0
    %1125 = vmatpush1.msra.mxu0 %v778
    %1126 = vmatprep.subr.mxu0 0.0
    %1127 = vmatpush1.msra.mxu0 %v781
    %1128 = vmatprep.subr.mxu0 0.0
    %1129 = vmatpush1.msra.mxu0 %v784
    %1130 = vmatprep.subr.mxu0 0.0
    %1131 = vmatpush1.msra.mxu0 %v787
    %1132 = vmatprep.subr.mxu0 0.0
    %1133 = vmatpush1.msra.mxu0 %v790
    %1134 = vmatprep.subr.mxu0 0.0
    %1135 = vmatpush1.msra.mxu0 %v793
    %1136 = vmatprep.subr.mxu0 0.0
    %1137 = vmatpush1.msra.mxu0 %v796
    %1138 = vmatprep.subr.mxu0 0.0
    %1139 = vmatpush1.msra.mxu0 %v799
    %1140 = vmatprep.subr.mxu0 0.0
    %1141 = vmatpush1.msra.mxu0 %v802
    %1142 = vmatprep.subr.mxu0 0.0
    %1143 = vmatpush1.msra.mxu0 %v805
    %1144 = vmatprep.subr.mxu0 0.0
    %1145 = vmatpush1.msra.mxu0 %v808
    %1146 = vmatprep.subr.mxu0 0.0
    %1147 = vmatpush1.msra.mxu0 %v811
    %1148 = vmatprep.subr.mxu0 0.0
    %1149 = vmatpush1.msra.mxu0 %v814
    %1150 = vmatprep.subr.mxu0 0.0
    %1151 = vmatpush1.msra.mxu0 %v817
    %1152 = vmatprep.subr.mxu0 0.0
    %1153 = vmatpush1.msra.mxu0 %v820
    %1154 = vmatprep.subr.mxu0 0.0
    %1155 = vmatpush1.msra.mxu0 %v823
    %1156 = vmatprep.subr.mxu0 0.0
    %1157 = vmatpush1.msra.mxu0 %v826
    %1158 = vmatprep.subr.mxu0 0.0
    %1159 = vmatpush1.msra.mxu0 %v829
    %1160 = vmatprep.subr.mxu0 0.0
    %1161 = vmatpush1.msra.mxu0 %v832
    %1162 = vmatprep.subr.mxu0 0.0
    %1163 = vmatpush1.msra.mxu0 %v835
    %1164 = vmatprep.subr.mxu0 0.0
    %1165 = vmatpush1.msra.mxu0 %v838
    %1166 = vmatprep.subr.mxu0 0.0
    %1167 = vmatpush1.msra.mxu0 %v841
    %1168 = vmatprep.subr.mxu0 0.0
    %1169 = vmatpush1.msra.mxu0 %v844
    %1170 = vmatprep.subr.mxu0 0.0
    %1171 = vmatpush1.msra.mxu0 %v847
    %1172 = vmatprep.subr.mxu0 0.0
    %1173 = vmatpush1.msra.mxu0 %v850
    %1174 = vmatprep.subr.mxu0 0.0
    %1175 = vmatpush1.msra.mxu0 %v853
    %1176 = vmatprep.subr.mxu0 0.0
    %1177 = vmatpush1.msra.mxu0 %v856
    %1178 = vmatprep.subr.mxu0 0.0
    %1179 = vmatpush1.msra.mxu0 %v859
    %1180 = vmatprep.subr.mxu0 0.0
    %1181 = vmatpush1.msra.mxu0 %v862
    %1182 = vmatprep.mubr.f32.mxu0 %v760
    %1183 = vmatmul.mubr.f32.gmra.mrb[0].mxu0 %v759
    %v1184 = vpop.f32.mrb[0].mxu0
    %v1185 = vadd.f32 %v972, %v1184
    %v1186 = vpop.f32.mrb[0].mxu0
    %1187 = vdwg.mxu0
    %1188 = vmatprep.subr.mxu0 0.0
    %1189 = vmatpush1.msra.mxu0 %v865
    %1190 = vmatprep.subr.mxu0 0.0
    %1191 = vmatpush1.msra.mxu0 %v868
    %1192 = vmatprep.subr.mxu0 0.0
    %1193 = vmatpush1.msra.mxu0 %v871
    %1194 = vmatprep.subr.mxu0 0.0
    %1195 = vmatpush1.msra.mxu0 %v874
    %1196 = vmatprep.subr.mxu0 0.0
    %1197 = vmatpush1.msra.mxu0 %v877
    %1198 = vmatprep.subr.mxu0 0.0
    %1199 = vmatpush1.msra.mxu0 %v880
    %1200 = vmatprep.subr.mxu0 0.0
    %1201 = vmatpush1.msra.mxu0 %v883
    %1202 = vmatprep.subr.mxu0 0.0
    %1203 = vmatpush1.msra.mxu0 %v886
    %1204 = vmatprep.subr.mxu0 0.0
    %1205 = vmatpush1.msra.mxu0 %v889
    %1206 = vmatprep.subr.mxu0 0.0
    %1207 = vmatpush1.msra.mxu0 %v892
    %1208 = vmatprep.subr.mxu0 0.0
    %1209 = vmatpush1.msra.mxu0 %v895
    %1210 = vmatprep.subr.mxu0 0.0
    %1211 = vmatpush1.msra.mxu0 %v898
    %1212 = vmatprep.subr.mxu0 0.0
    %1213 = vmatpush1.msra.mxu0 %v901
    %1214 = vmatprep.subr.mxu0 0.0
    %1215 = vmatpush1.msra.mxu0 %v904
    %1216 = vmatprep.subr.mxu0 0.0
    %1217 = vmatpush1.msra.mxu0 %v907
    %1218 = vmatprep.subr.mxu0 0.0
    %1219 = vmatpush1.msra.mxu0 %v910
    %1220 = vmatprep.subr.mxu0 0.0
    %1221 = vmatpush1.msra.mxu0 %v913
    %1222 = vmatprep.subr.mxu0 0.0
    %1223 = vmatpush1.msra.mxu0 %v916
    %1224 = vmatprep.subr.mxu0 0.0
    %1225 = vmatpush1.msra.mxu0 %v919
    %1226 = vmatprep.subr.mxu0 0.0
    %1227 = vmatpush1.msra.mxu0 %v922
    %1228 = vmatprep.subr.mxu0 0.0
    %1229 = vmatpush1.msra.mxu0 %v925
    %1230 = vmatprep.subr.mxu0 0.0
    %1231 = vmatpush1.msra.mxu0 %v928
    %1232 = vmatprep.subr.mxu0 0.0
    %1233 = vmatpush1.msra.mxu0 %v931
    %1234 = vmatprep.subr.mxu0 0.0
    %1235 = vmatpush1.msra.mxu0 %v934
    %1236 = vmatprep.subr.mxu0 0.0
    %1237 = vmatpush1.msra.mxu0 %v937
    %1238 = vmatprep.subr.mxu0 0.0
    %1239 = vmatpush1.msra.mxu0 %v940
    %1240 = vmatprep.subr.mxu0 0.0
    %1241 = vmatpush1.msra.mxu0 %v943
    %1242 = vmatprep.subr.mxu0 0.0
    %1243 = vmatpush1.msra.mxu0 %v946
    %1244 = vmatprep.subr.mxu0 0.0
    %1245 = vmatpush1.msra.mxu0 %v949
    %1246 = vmatprep.subr.mxu0 0.0
    %1247 = vmatpush1.msra.mxu0 %v952
    %1248 = vmatprep.subr.mxu0 0.0
    %1249 = vmatpush1.msra.mxu0 %v955
    %1250 = vmatprep.subr.mxu0 0.0
    %1251 = vmatpush1.msra.mxu0 %v958
    %1252 = vmatprep.mubr.f32.mxu0 %v762
    %1253 = vmatmul.mubr.f32.gmra.mrb[0].mxu0 %v761
    %v1254 = vpop.f32.mrb[0].mxu0
    %v1255 = vadd.f32 %v1185, %v1254
    %v1256 = vpop.f32.mrb[0].mxu0
    %1257 = vdwg.mxu0
    %v1258 = vmax.f32 %v1114, 0.0
    %v1259 = vmax.f32 %v1116, 0.0
    %v1260 = vmax.f32 %v1255, 0.0
    %v1261 = vld [vmem:[#allocation8] sm:$0xff]
    %v1262 = vld [vmem:[#allocation8 + $0x8] sm:$0xff]
    %v1263 = vld [vmem:[#allocation8 + $0x10] sm:$0xff]
    %v1264 = vld [vmem:[#allocation8 + $0x18] sm:$0xff]
    %v1265 = vld [vmem:[#allocation8 + $0x20] sm:$0xff]
    %v1266 = vld [vmem:[#allocation8 + $0x28] sm:$0xff]
    %v1267 = vld [vmem:[#allocation8 + $0x30] sm:$0xff]
    %v1268 = vld [vmem:[#allocation8 + $0x38] sm:$0xff]
    %v1269 = vld [vmem:[#allocation8 + $0x40] sm:$0xff]
    %v1270 = vld [vmem:[#allocation8 + $0x48] sm:$0xff]
    %v1271 = vld [vmem:[#allocation8 + $0x50] sm:$0xff]
    %v1272 = vld [vmem:[#allocation8 + $0x58] sm:$0xff]
    %v1273 = vld [vmem:[#allocation8 + $0x60] sm:$0xff]
    %v1274 = vld [vmem:[#allocation8 + $0x68] sm:$0xff]
    %v1275 = vld [vmem:[#allocation8 + $0x70] sm:$0xff]
    %v1276 = vld [vmem:[#allocation8 + $0x78] sm:$0xff]
    %v1277 = vld [vmem:[#allocation8 + $0x80] sm:$0xff]
    %v1278 = vld [vmem:[#allocation8 + $0x88] sm:$0xff]
    %v1279 = vld [vmem:[#allocation8 + $0x90] sm:$0xff]
    %v1280 = vld [vmem:[#allocation8 + $0x98] sm:$0xff]
    %v1281 = vld [vmem:[#allocation8 + $0xa0] sm:$0xff]
    %v1282 = vld [vmem:[#allocation8 + $0xa8] sm:$0xff]
    %v1283 = vld [vmem:[#allocation8 + $0xb0] sm:$0xff]
    %v1284 = vld [vmem:[#allocation8 + $0xb8] sm:$0xff]
    %v1285 = vld [vmem:[#allocation8 + $0xc0] sm:$0xff]
    %v1286 = vld [vmem:[#allocation8 + $0xc8] sm:$0xff]
    %v1287 = vld [vmem:[#allocation8 + $0xd0] sm:$0xff]
    %v1288 = vld [vmem:[#allocation8 + $0xd8] sm:$0xff]
    %v1289 = vld [vmem:[#allocation8 + $0xe0] sm:$0xff]
    %v1290 = vld [vmem:[#allocation8 + $0xe8] sm:$0xff]
    %v1291 = vld [vmem:[#allocation8 + $0xf0] sm:$0xff]
    %v1292 = vld [vmem:[#allocation8 + $0xf8] sm:$0xff]
    %v1293 = vld [vmem:[#allocation8 + $0x100] sm:$0xff]
    %v1294 = vld [vmem:[#allocation8 + $0x108] sm:$0xff]
    %v1295 = vld [vmem:[#allocation8 + $0x110] sm:$0xff]
    %v1296 = vld [vmem:[#allocation8 + $0x118] sm:$0xff]
    %v1297 = vld [vmem:[#allocation8 + $0x120] sm:$0xff]
    %v1298 = vld [vmem:[#allocation8 + $0x128] sm:$0xff]
    %v1299 = vld [vmem:[#allocation8 + $0x130] sm:$0xff]
    %v1300 = vld [vmem:[#allocation8 + $0x138] sm:$0xff]
    %v1301 = vld [vmem:[#allocation8 + $0x140] sm:$0xff]
    %v1302 = vld [vmem:[#allocation8 + $0x148] sm:$0xff]
    %v1303 = vld [vmem:[#allocation8 + $0x150] sm:$0xff]
    %v1304 = vld [vmem:[#allocation8 + $0x158] sm:$0xff]
    %v1305 = vld [vmem:[#allocation8 + $0x160] sm:$0xff]
    %v1306 = vld [vmem:[#allocation8 + $0x168] sm:$0xff]
    %v1307 = vld [vmem:[#allocation8 + $0x170] sm:$0xff]
    %v1308 = vld [vmem:[#allocation8 + $0x178] sm:$0xff]
    %v1309 = vld [vmem:[#allocation8 + $0x180] sm:$0xff]
    %v1310 = vld [vmem:[#allocation8 + $0x188] sm:$0xff]
    %v1311 = vld [vmem:[#allocation8 + $0x190] sm:$0xff]
    %v1312 = vld [vmem:[#allocation8 + $0x198] sm:$0xff]
    %v1313 = vld [vmem:[#allocation8 + $0x1a0] sm:$0xff]
    %v1314 = vld [vmem:[#allocation8 + $0x1a8] sm:$0xff]
    %v1315 = vld [vmem:[#allocation8 + $0x1b0] sm:$0xff]
    %v1316 = vld [vmem:[#allocation8 + $0x1b8] sm:$0xff]
    %v1317 = vld [vmem:[#allocation8 + $0x1c0] sm:$0xff]
    %v1318 = vld [vmem:[#allocation8 + $0x1c8] sm:$0xff]
    %v1319 = vld [vmem:[#allocation8 + $0x1d0] sm:$0xff]
    %v1320 = vld [vmem:[#allocation8 + $0x1d8] sm:$0xff]
    %v1321 = vld [vmem:[#allocation8 + $0x1e0] sm:$0xff]
    %v1322 = vld [vmem:[#allocation8 + $0x1e8] sm:$0xff]
    %v1323 = vld [vmem:[#allocation8 + $0x1f0] sm:$0xff]
    %v1324 = vld [vmem:[#allocation8 + $0x1f8] sm:$0xff]
    %v1325 = vld [vmem:[#allocation8 + $0x200] sm:$0xff]
    %v1326 = vld [vmem:[#allocation8 + $0x208] sm:$0xff]
    %v1327 = vld [vmem:[#allocation8 + $0x210] sm:$0xff]
    %v1328 = vld [vmem:[#allocation8 + $0x218] sm:$0xff]
    %v1329 = vld [vmem:[#allocation8 + $0x220] sm:$0xff]
    %v1330 = vld [vmem:[#allocation8 + $0x228] sm:$0xff]
    %v1331 = vld [vmem:[#allocation8 + $0x230] sm:$0xff]
    %v1332 = vld [vmem:[#allocation8 + $0x238] sm:$0xff]
    %v1333 = vld [vmem:[#allocation8 + $0x240] sm:$0xff]
    %v1334 = vld [vmem:[#allocation8 + $0x248] sm:$0xff]
    %v1335 = vld [vmem:[#allocation8 + $0x250] sm:$0xff]
    %v1336 = vld [vmem:[#allocation8 + $0x258] sm:$0xff]
    %v1337 = vld [vmem:[#allocation8 + $0x260] sm:$0xff]
    %v1338 = vld [vmem:[#allocation8 + $0x268] sm:$0xff]
    %v1339 = vld [vmem:[#allocation8 + $0x270] sm:$0xff]
    %v1340 = vld [vmem:[#allocation8 + $0x278] sm:$0xff]
    %v1341 = vld [vmem:[#allocation8 + $0x280] sm:$0xff]
    %v1342 = vld [vmem:[#allocation8 + $0x288] sm:$0xff]
    %v1343 = vld [vmem:[#allocation8 + $0x290] sm:$0xff]
    %v1344 = vld [vmem:[#allocation8 + $0x298] sm:$0xff]
    %v1345 = vld [vmem:[#allocation8 + $0x2a0] sm:$0xff]
    %v1346 = vld [vmem:[#allocation8 + $0x2a8] sm:$0xff]
    %v1347 = vld [vmem:[#allocation8 + $0x2b0] sm:$0xff]
    %v1348 = vld [vmem:[#allocation8 + $0x2b8] sm:$0xff]
    %v1349 = vld [vmem:[#allocation8 + $0x2c0] sm:$0xff]
    %v1350 = vld [vmem:[#allocation8 + $0x2c8] sm:$0xff]
    %v1351 = vld [vmem:[#allocation8 + $0x2d0] sm:$0xff]
    %v1352 = vld [vmem:[#allocation8 + $0x2d8] sm:$0xff]
    %v1353 = vld [vmem:[#allocation8 + $0x2e0] sm:$0xff]
    %v1354 = vld [vmem:[#allocation8 + $0x2e8] sm:$0xff]
    %v1355 = vld [vmem:[#allocation8 + $0x2f0] sm:$0xff]
    %v1356 = vld [vmem:[#allocation8 + $0x2f8] sm:$0xff]
    %v1357 = vld [vmem:[#allocation8 + $0x300] sm:$0xff]
    %v1358 = vld [vmem:[#allocation8 + $0x308] sm:$0xff]
    %v1359 = vld [vmem:[#allocation8 + $0x310] sm:$0xff]
    %v1360 = vld [vmem:[#allocation8 + $0x318] sm:$0xff]
    %v1361 = vld [vmem:[#allocation8 + $0x320] sm:$0xff]
    %v1362 = vld [vmem:[#allocation8 + $0x328] sm:$0xff]
    %v1363 = vld [vmem:[#allocation8 + $0x330] sm:$0xff]
    %v1364 = vld [vmem:[#allocation8 + $0x338] sm:$0xff]
    %v1365 = vld [vmem:[#allocation8 + $0x340] sm:$0xff]
    %v1366 = vld [vmem:[#allocation8 + $0x348] sm:$0xff]
    %v1367 = vld [vmem:[#allocation8 + $0x350] sm:$0xff]
    %v1368 = vld [vmem:[#allocation8 + $0x358] sm:$0xff]
    %v1369 = vld [vmem:[#allocation8 + $0x360] sm:$0xff]
    %v1370 = vld [vmem:[#allocation8 + $0x368] sm:$0xff]
    %v1371 = vld [vmem:[#allocation8 + $0x370] sm:$0xff]
    %v1372 = vld [vmem:[#allocation8 + $0x378] sm:$0xff]
    %v1373 = vld [vmem:[#allocation8 + $0x380] sm:$0xff]
    %v1374 = vld [vmem:[#allocation8 + $0x388] sm:$0xff]
    %v1375 = vld [vmem:[#allocation8 + $0x390] sm:$0xff]
    %v1376 = vld [vmem:[#allocation8 + $0x398] sm:$0xff]
    %v1377 = vld [vmem:[#allocation8 + $0x3a0] sm:$0xff]
    %v1378 = vld [vmem:[#allocation8 + $0x3a8] sm:$0xff]
    %v1379 = vld [vmem:[#allocation8 + $0x3b0] sm:$0xff]
    %v1380 = vld [vmem:[#allocation8 + $0x3b8] sm:$0xff]
    %v1381 = vld [vmem:[#allocation8 + $0x3c0] sm:$0xff]
    %v1382 = vld [vmem:[#allocation8 + $0x3c8] sm:$0xff]
    %v1383 = vld [vmem:[#allocation8 + $0x3d0] sm:$0xff]
    %v1384 = vld [vmem:[#allocation8 + $0x3d8] sm:$0xff]
    %v1385 = vld [vmem:[#allocation8 + $0x3e0] sm:$0xff]
    %v1386 = vld [vmem:[#allocation8 + $0x3e8] sm:$0xff]
    %v1387 = vld [vmem:[#allocation8 + $0x3f0] sm:$0xff]
    %v1388 = vld [vmem:[#allocation8 + $0x3f8] sm:$0xff]
    %v1389 = vld [vmem:[#allocation8 + $0x400] sm:$0xff]
    %v1390 = vld [vmem:[#allocation8 + $0x408] sm:$0xff]
    %v1391 = vld [vmem:[#allocation8 + $0x410] sm:$0xff]
    %v1392 = vld [vmem:[#allocation8 + $0x418] sm:$0xff]
    %v1393 = vld [vmem:[#allocation8 + $0x420] sm:$0xff]
    %v1394 = vld [vmem:[#allocation8 + $0x428] sm:$0xff]
    %v1395 = vld [vmem:[#allocation8 + $0x430] sm:$0xff]
    %v1396 = vld [vmem:[#allocation8 + $0x438] sm:$0xff]
    %v1397 = vld [vmem:[#allocation8 + $0x440] sm:$0xff]
    %v1398 = vld [vmem:[#allocation8 + $0x448] sm:$0xff]
    %v1399 = vld [vmem:[#allocation8 + $0x450] sm:$0xff]
    %v1400 = vld [vmem:[#allocation8 + $0x458] sm:$0xff]
    %v1401 = vld [vmem:[#allocation8 + $0x460] sm:$0xff]
    %v1402 = vld [vmem:[#allocation8 + $0x468] sm:$0xff]
    %v1403 = vld [vmem:[#allocation8 + $0x470] sm:$0xff]
    %v1404 = vld [vmem:[#allocation8 + $0x478] sm:$0xff]
    %v1405 = vld [vmem:[#allocation8 + $0x480] sm:$0xff]
    %v1406 = vld [vmem:[#allocation8 + $0x488] sm:$0xff]
    %v1407 = vld [vmem:[#allocation8 + $0x490] sm:$0xff]
    %v1408 = vld [vmem:[#allocation8 + $0x498] sm:$0xff]
    %v1409 = vld [vmem:[#allocation8 + $0x4a0] sm:$0xff]
    %v1410 = vld [vmem:[#allocation8 + $0x4a8] sm:$0xff]
    %v1411 = vld [vmem:[#allocation8 + $0x4b0] sm:$0xff]
    %v1412 = vld [vmem:[#allocation8 + $0x4b8] sm:$0xff]
    %v1413 = vld [vmem:[#allocation8 + $0x4c0] sm:$0xff]
    %v1414 = vld [vmem:[#allocation8 + $0x4c8] sm:$0xff]
    %v1415 = vld [vmem:[#allocation8 + $0x4d0] sm:$0xff]
    %v1416 = vld [vmem:[#allocation8 + $0x4d8] sm:$0xff]
    %v1417 = vld [vmem:[#allocation8 + $0x4e0] sm:$0xff]
    %v1418 = vld [vmem:[#allocation8 + $0x4e8] sm:$0xff]
    %v1419 = vld [vmem:[#allocation8 + $0x4f0] sm:$0xff]
    %v1420 = vld [vmem:[#allocation8 + $0x4f8] sm:$0xff]
    %v1421 = vld [vmem:[#allocation8 + $0x500] sm:$0xff]
    %v1422 = vld [vmem:[#allocation8 + $0x508] sm:$0xff]
    %v1423 = vld [vmem:[#allocation8 + $0x510] sm:$0xff]
    %v1424 = vld [vmem:[#allocation8 + $0x518] sm:$0xff]
    %v1425 = vld [vmem:[#allocation8 + $0x520] sm:$0xff]
    %v1426 = vld [vmem:[#allocation8 + $0x528] sm:$0xff]
    %v1427 = vld [vmem:[#allocation8 + $0x530] sm:$0xff]
    %v1428 = vld [vmem:[#allocation8 + $0x538] sm:$0xff]
    %v1429 = vld [vmem:[#allocation8 + $0x540] sm:$0xff]
    %v1430 = vld [vmem:[#allocation8 + $0x548] sm:$0xff]
    %v1431 = vld [vmem:[#allocation8 + $0x550] sm:$0xff]
    %v1432 = vld [vmem:[#allocation8 + $0x558] sm:$0xff]
    %v1433 = vld [vmem:[#allocation8 + $0x560] sm:$0xff]
    %v1434 = vld [vmem:[#allocation8 + $0x568] sm:$0xff]
    %v1435 = vld [vmem:[#allocation8 + $0x570] sm:$0xff]
    %v1436 = vld [vmem:[#allocation8 + $0x578] sm:$0xff]
    %v1437 = vld [vmem:[#allocation8 + $0x580] sm:$0xff]
    %v1438 = vld [vmem:[#allocation8 + $0x588] sm:$0xff]
    %v1439 = vld [vmem:[#allocation8 + $0x590] sm:$0xff]
    %v1440 = vld [vmem:[#allocation8 + $0x598] sm:$0xff]
    %v1441 = vld [vmem:[#allocation8 + $0x5a0] sm:$0xff]
    %v1442 = vld [vmem:[#allocation8 + $0x5a8] sm:$0xff]
    %v1443 = vld [vmem:[#allocation8 + $0x5b0] sm:$0xff]
    %v1444 = vld [vmem:[#allocation8 + $0x5b8] sm:$0xff]
    %v1445 = vld [vmem:[#allocation8 + $0x5c0] sm:$0xff]
    %v1446 = vld [vmem:[#allocation8 + $0x5c8] sm:$0xff]
    %v1447 = vld [vmem:[#allocation8 + $0x5d0] sm:$0xff]
    %v1448 = vld [vmem:[#allocation8 + $0x5d8] sm:$0xff]
    %v1449 = vld [vmem:[#allocation8 + $0x5e0] sm:$0xff]
    %v1450 = vld [vmem:[#allocation8 + $0x5e8] sm:$0xff]
    %v1451 = vld [vmem:[#allocation8 + $0x5f0] sm:$0xff]
    %v1452 = vld [vmem:[#allocation8 + $0x5f8] sm:$0xff]
    %v1453 = vld [vmem:[%s7 + $0xb] sm:$0x7]
    %v1455 = vlaneseq
    %v1456 = vshrl.u32 %v1455, 7
    %v1457 = vsub.s32 0, %v1456
    %v1458 = vrot.slane %v1453, %v1457
    %v1459 = vlaneseq
    %v1460 = vshrl.u32 %v1459, 7
    %v1461 = vsub.s32 1, %v1460
    %v1462 = vrot.slane %v1453, %v1461
    %v1463 = vlaneseq
    %v1464 = vshrl.u32 %v1463, 7
    %v1465 = vsub.s32 2, %v1464
    %v1466 = vrot.slane %v1453, %v1465
    %1470 = vmatprep.subr.mxu0 %v1262
    %1471 = vmatpush1.msra.mxu0 %v1261
    %1472 = vmatprep.subr.mxu0 %v1265
    %1473 = vmatpush1.msra.mxu0 %v1264
    %1474 = vmatprep.subr.mxu0 %v1268
    %1475 = vmatpush1.msra.mxu0 %v1267
    %1476 = vmatprep.subr.mxu0 %v1271
    %1477 = vmatpush1.msra.mxu0 %v1270
    %1478 = vmatprep.subr.mxu0 %v1274
    %1479 = vmatpush1.msra.mxu0 %v1273
    %1480 = vmatprep.subr.mxu0 %v1277
    %1481 = vmatpush1.msra.mxu0 %v1276
    %1482 = vmatprep.subr.mxu0 %v1280
    %1483 = vmatpush1.msra.mxu0 %v1279
    %1484 = vmatprep.subr.mxu0 %v1283
    %1485 = vmatpush1.msra.mxu0 %v1282
    %1486 = vmatprep.subr.mxu0 %v1286
    %1487 = vmatpush1.msra.mxu0 %v1285
    %1488 = vmatprep.subr.mxu0 %v1289
    %1489 = vmatpush1.msra.mxu0 %v1288
    %1490 = vmatprep.subr.mxu0 %v1292
    %1491 = vmatpush1.msra.mxu0 %v1291
    %1492 = vmatprep.subr.mxu0 %v1295
    %1493 = vmatpush1.msra.mxu0 %v1294
    %1494 = vmatprep.subr.mxu0 %v1298
    %1495 = vmatpush1.msra.mxu0 %v1297
    %1496 = vmatprep.subr.mxu0 %v1301
    %1497 = vmatpush1.msra.mxu0 %v1300
    %1498 = vmatprep.subr.mxu0 %v1304
    %1499 = vmatpush1.msra.mxu0 %v1303
    %1500 = vmatprep.subr.mxu0 %v1307
    %1501 = vmatpush1.msra.mxu0 %v1306
    %1502 = vmatprep.subr.mxu0 %v1310
    %1503 = vmatpush1.msra.mxu0 %v1309
    %1504 = vmatprep.subr.mxu0 %v1313
    %1505 = vmatpush1.msra.mxu0 %v1312
    %1506 = vmatprep.subr.mxu0 %v1316
    %1507 = vmatpush1.msra.mxu0 %v1315
    %1508 = vmatprep.subr.mxu0 %v1319
    %1509 = vmatpush1.msra.mxu0 %v1318
    %1510 = vmatprep.subr.mxu0 %v1322
    %1511 = vmatpush1.msra.mxu0 %v1321
    %1512 = vmatprep.subr.mxu0 %v1325
    %1513 = vmatpush1.msra.mxu0 %v1324
    %1514 = vmatprep.subr.mxu0 %v1328
    %1515 = vmatpush1.msra.mxu0 %v1327
    %1516 = vmatprep.subr.mxu0 %v1331
    %1517 = vmatpush1.msra.mxu0 %v1330
    %1518 = vmatprep.subr.mxu0 %v1334
    %1519 = vmatpush1.msra.mxu0 %v1333
    %1520 = vmatprep.subr.mxu0 %v1337
    %1521 = vmatpush1.msra.mxu0 %v1336
    %1522 = vmatprep.subr.mxu0 %v1340
    %1523 = vmatpush1.msra.mxu0 %v1339
    %1524 = vmatprep.subr.mxu0 %v1343
    %1525 = vmatpush1.msra.mxu0 %v1342
    %1526 = vmatprep.subr.mxu0 %v1346
    %1527 = vmatpush1.msra.mxu0 %v1345
    %1528 = vmatprep.subr.mxu0 %v1349
    %1529 = vmatpush1.msra.mxu0 %v1348
    %1530 = vmatprep.subr.mxu0 %v1352
    %1531 = vmatpush1.msra.mxu0 %v1351
    %1532 = vmatprep.subr.mxu0 %v1355
    %1533 = vmatpush1.msra.mxu0 %v1354
    %1534 = vmatprep.mubr.f32.mxu0 %v764
    %1535 = vmatmul.mubr.f32.gmra.mrb[0].mxu0 %v763
    %v1536 = vpop.f32.mrb[0].mxu0
    %v1537 = vadd.f32 %v1458, %v1536
    %v1538 = vpop.f32.mrb[0].mxu0
    %v1539 = vadd.f32 %v1462, %v1538
    %1540 = vdwg.mxu0
    %1541 = vmatprep.subr.mxu0 %v1358
    %1542 = vmatpush1.msra.mxu0 %v1357
    %1543 = vmatprep.subr.mxu0 %v1361
    %1544 = vmatpush1.msra.mxu0 %v1360
    %1545 = vmatprep.subr.mxu0 %v1364
    %1546 = vmatpush1.msra.mxu0 %v1363
    %1547 = vmatprep.subr.mxu0 %v1367
    %1548 = vmatpush1.msra.mxu0 %v1366
    %1549 = vmatprep.subr.mxu0 %v1370
    %1550 = vmatpush1.msra.mxu0 %v1369
    %1551 = vmatprep.subr.mxu0 %v1373
    %1552 = vmatpush1.msra.mxu0 %v1372
    %1553 = vmatprep.subr.mxu0 %v1376
    %1554 = vmatpush1.msra.mxu0 %v1375
    %1555 = vmatprep.subr.mxu0 %v1379
    %1556 = vmatpush1.msra.mxu0 %v1378
    %1557 = vmatprep.subr.mxu0 %v1382
    %1558 = vmatpush1.msra.mxu0 %v1381
    %1559 = vmatprep.subr.mxu0 %v1385
    %1560 = vmatpush1.msra.mxu0 %v1384
    %1561 = vmatprep.subr.mxu0 %v1388
    %1562 = vmatpush1.msra.mxu0 %v1387
    %1563 = vmatprep.subr.mxu0 %v1391
    %1564 = vmatpush1.msra.mxu0 %v1390
    %1565 = vmatprep.subr.mxu0 %v1394
    %1566 = vmatpush1.msra.mxu0 %v1393
    %1567 = vmatprep.subr.mxu0 %v1397
    %1568 = vmatpush1.msra.mxu0 %v1396
    %1569 = vmatprep.subr.mxu0 %v1400
    %1570 = vmatpush1.msra.mxu0 %v1399
    %1571 = vmatprep.subr.mxu0 %v1403
    %1572 = vmatpush1.msra.mxu0 %v1402
    %1573 = vmatprep.subr.mxu0 %v1406
    %1574 = vmatpush1.msra.mxu0 %v1405
    %1575 = vmatprep.subr.mxu0 %v1409
    %1576 = vmatpush1.msra.mxu0 %v1408
    %1577 = vmatprep.subr.mxu0 %v1412
    %1578 = vmatpush1.msra.mxu0 %v1411
    %1579 = vmatprep.subr.mxu0 %v1415
    %1580 = vmatpush1.msra.mxu0 %v1414
    %1581 = vmatprep.subr.mxu0 %v1418
    %1582 = vmatpush1.msra.mxu0 %v1417
    %1583 = vmatprep.subr.mxu0 %v1421
    %1584 = vmatpush1.msra.mxu0 %v1420
    %1585 = vmatprep.subr.mxu0 %v1424
    %1586 = vmatpush1.msra.mxu0 %v1423
    %1587 = vmatprep.subr.mxu0 %v1427
    %1588 = vmatpush1.msra.mxu0 %v1426
    %1589 = vmatprep.subr.mxu0 %v1430
    %1590 = vmatpush1.msra.mxu0 %v1429
    %1591 = vmatprep.subr.mxu0 %v1433
    %1592 = vmatpush1.msra.mxu0 %v1432
    %1593 = vmatprep.subr.mxu0 %v1436
    %1594 = vmatpush1.msra.mxu0 %v1435
    %1595 = vmatprep.subr.mxu0 %v1439
    %1596 = vmatpush1.msra.mxu0 %v1438
    %1597 = vmatprep.subr.mxu0 %v1442
    %1598 = vmatpush1.msra.mxu0 %v1441
    %1599 = vmatprep.subr.mxu0 %v1445
    %1600 = vmatpush1.msra.mxu0 %v1444
    %1601 = vmatprep.subr.mxu0 %v1448
    %1602 = vmatpush1.msra.mxu0 %v1447
    %1603 = vmatprep.subr.mxu0 %v1451
    %1604 = vmatpush1.msra.mxu0 %v1450
    %1605 = vmatprep.mubr.f32.mxu0 %v766
    %1606 = vmatmul.mubr.f32.gmra.mrb[0].mxu0 %v765
    %v1607 = vpop.f32.mrb[0].mxu0
    %v1608 = vadd.f32 %v1537, %v1607
    %v1609 = vpop.f32.mrb[0].mxu0
    %v1610 = vadd.f32 %v1539, %v1609
    %1611 = vdwg.mxu0
    %1612 = vmatprep.subr.mxu0 0.0
    %1613 = vmatpush1.msra.mxu0 %v1263
    %1614 = vmatprep.subr.mxu0 0.0
    %1615 = vmatpush1.msra.mxu0 %v1266
    %1616 = vmatprep.subr.mxu0 0.0
    %1617 = vmatpush1.msra.mxu0 %v1269
    %1618 = vmatprep.subr.mxu0 0.0
    %1619 = vmatpush1.msra.mxu0 %v1272
    %1620 = vmatprep.subr.mxu0 0.0
    %1621 = vmatpush1.msra.mxu0 %v1275
    %1622 = vmatprep.subr.mxu0 0.0
    %1623 = vmatpush1.msra.mxu0 %v1278
    %1624 = vmatprep.subr.mxu0 0.0
    %1625 = vmatpush1.msra.mxu0 %v1281
    %1626 = vmatprep.subr.mxu0 0.0
    %1627 = vmatpush1.msra.mxu0 %v1284
    %1628 = vmatprep.subr.mxu0 0.0
    %1629 = vmatpush1.msra.mxu0 %v1287
    %1630 = vmatprep.subr.mxu0 0.0
    %1631 = vmatpush1.msra.mxu0 %v1290
    %1632 = vmatprep.subr.mxu0 0.0
    %1633 = vmatpush1.msra.mxu0 %v1293
    %1634 = vmatprep.subr.mxu0 0.0
    %1635 = vmatpush1.msra.mxu0 %v1296
    %1636 = vmatprep.subr.mxu0 0.0
    %1637 = vmatpush1.msra.mxu0 %v1299
    %1638 = vmatprep.subr.mxu0 0.0
    %1639 = vmatpush1.msra.mxu0 %v1302
    %1640 = vmatprep.subr.mxu0 0.0
    %1641 = vmatpush1.msra.mxu0 %v1305
    %1642 = vmatprep.subr.mxu0 0.0
    %1643 = vmatpush1.msra.mxu0 %v1308
    %1644 = vmatprep.subr.mxu0 0.0
    %1645 = vmatpush1.msra.mxu0 %v1311
    %1646 = vmatprep.subr.mxu0 0.0
    %1647 = vmatpush1.msra.mxu0 %v1314
    %1648 = vmatprep.subr.mxu0 0.0
    %1649 = vmatpush1.msra.mxu0 %v1317
    %1650 = vmatprep.subr.mxu0 0.0
    %1651 = vmatpush1.msra.mxu0 %v1320
    %1652 = vmatprep.subr.mxu0 0.0
    %1653 = vmatpush1.msra.mxu0 %v1323
    %1654 = vmatprep.subr.mxu0 0.0
    %1655 = vmatpush1.msra.mxu0 %v1326
    %1656 = vmatprep.subr.mxu0 0.0
    %1657 = vmatpush1.msra.mxu0 %v1329
    %1658 = vmatprep.subr.mxu0 0.0
    %1659 = vmatpush1.msra.mxu0 %v1332
    %1660 = vmatprep.subr.mxu0 0.0
    %1661 = vmatpush1.msra.mxu0 %v1335
    %1662 = vmatprep.subr.mxu0 0.0
    %1663 = vmatpush1.msra.mxu0 %v1338
    %1664 = vmatprep.subr.mxu0 0.0
    %1665 = vmatpush1.msra.mxu0 %v1341
    %1666 = vmatprep.subr.mxu0 0.0
    %1667 = vmatpush1.msra.mxu0 %v1344
    %1668 = vmatprep.subr.mxu0 0.0
    %1669 = vmatpush1.msra.mxu0 %v1347
    %1670 = vmatprep.subr.mxu0 0.0
    %1671 = vmatpush1.msra.mxu0 %v1350
    %1672 = vmatprep.subr.mxu0 0.0
    %1673 = vmatpush1.msra.mxu0 %v1353
    %1674 = vmatprep.subr.mxu0 0.0
    %1675 = vmatpush1.msra.mxu0 %v1356
    %1676 = vmatprep.mubr.f32.mxu0 %v764
    %1677 = vmatmul.mubr.f32.gmra.mrb[0].mxu0 %v763
    %v1678 = vpop.f32.mrb[0].mxu0
    %v1679 = vadd.f32 %v1466, %v1678
    %v1680 = vpop.f32.mrb[0].mxu0
    %1681 = vdwg.mxu0
    %1682 = vmatprep.subr.mxu0 0.0
    %1683 = vmatpush1.msra.mxu0 %v1359
    %1684 = vmatprep.subr.mxu0 0.0
    %1685 = vmatpush1.msra.mxu0 %v1362
    %1686 = vmatprep.subr.mxu0 0.0
    %1687 = vmatpush1.msra.mxu0 %v1365
    %1688 = vmatprep.subr.mxu0 0.0
    %1689 = vmatpush1.msra.mxu0 %v1368
    %1690 = vmatprep.subr.mxu0 0.0
    %1691 = vmatpush1.msra.mxu0 %v1371
    %1692 = vmatprep.subr.mxu0 0.0
    %1693 = vmatpush1.msra.mxu0 %v1374
    %1694 = vmatprep.subr.mxu0 0.0
    %1695 = vmatpush1.msra.mxu0 %v1377
    %1696 = vmatprep.subr.mxu0 0.0
    %1697 = vmatpush1.msra.mxu0 %v1380
    %1698 = vmatprep.subr.mxu0 0.0
    %1699 = vmatpush1.msra.mxu0 %v1383
    %1700 = vmatprep.subr.mxu0 0.0
    %1701 = vmatpush1.msra.mxu0 %v1386
    %1702 = vmatprep.subr.mxu0 0.0
    %1703 = vmatpush1.msra.mxu0 %v1389
    %1704 = vmatprep.subr.mxu0 0.0
    %1705 = vmatpush1.msra.mxu0 %v1392
    %1706 = vmatprep.subr.mxu0 0.0
    %1707 = vmatpush1.msra.mxu0 %v1395
    %1708 = vmatprep.subr.mxu0 0.0
    %1709 = vmatpush1.msra.mxu0 %v1398
    %1710 = vmatprep.subr.mxu0 0.0
    %1711 = vmatpush1.msra.mxu0 %v1401
    %1712 = vmatprep.subr.mxu0 0.0
    %1713 = vmatpush1.msra.mxu0 %v1404
    %1714 = vmatprep.subr.mxu0 0.0
    %1715 = vmatpush1.msra.mxu0 %v1407
    %1716 = vmatprep.subr.mxu0 0.0
    %1717 = vmatpush1.msra.mxu0 %v1410
    %1718 = vmatprep.subr.mxu0 0.0
    %1719 = vmatpush1.msra.mxu0 %v1413
    %1720 = vmatprep.subr.mxu0 0.0
    %1721 = vmatpush1.msra.mxu0 %v1416
    %1722 = vmatprep.subr.mxu0 0.0
    %1723 = vmatpush1.msra.mxu0 %v1419
    %1724 = vmatprep.subr.mxu0 0.0
    %1725 = vmatpush1.msra.mxu0 %v1422
    %1726 = vmatprep.subr.mxu0 0.0
    %1727 = vmatpush1.msra.mxu0 %v1425
    %1728 = vmatprep.subr.mxu0 0.0
    %1729 = vmatpush1.msra.mxu0 %v1428
    %1730 = vmatprep.subr.mxu0 0.0
    %1731 = vmatpush1.msra.mxu0 %v1431
    %1732 = vmatprep.subr.mxu0 0.0
    %1733 = vmatpush1.msra.mxu0 %v1434
    %1734 = vmatprep.subr.mxu0 0.0
    %1735 = vmatpush1.msra.mxu0 %v1437
    %1736 = vmatprep.subr.mxu0 0.0
    %1737 = vmatpush1.msra.mxu0 %v1440
    %1738 = vmatprep.subr.mxu0 0.0
    %1739 = vmatpush1.msra.mxu0 %v1443
    %1740 = vmatprep.subr.mxu0 0.0
    %1741 = vmatpush1.msra.mxu0 %v1446
    %1742 = vmatprep.subr.mxu0 0.0
    %1743 = vmatpush1.msra.mxu0 %v1449
    %1744 = vmatprep.subr.mxu0 0.0
    %1745 = vmatpush1.msra.mxu0 %v1452
    %1746 = vmatprep.mubr.f32.mxu0 %v766
    %1747 = vmatmul.mubr.f32.gmra.mrb[0].mxu0 %v765
    %v1748 = vpop.f32.mrb[0].mxu0
    %v1749 = vadd.f32 %v1679, %v1748
    %v1750 = vpop.f32.mrb[0].mxu0
    %1751 = vdwg.mxu0
    %v1752 = vmax.f32 %v1608, 0.0
    %v1753 = vmax.f32 %v1610, 0.0
    %v1754 = vmax.f32 %v1749, 0.0
    %v1755 = vld [vmem:[#allocation10] sm:$0xff]
    %v1756 = vld [vmem:[#allocation10 + $0x8] sm:$0xff]
    %v1757 = vld [vmem:[#allocation10 + $0x10] sm:$0xff]
    %v1758 = vld [vmem:[#allocation10 + $0x18] sm:$0xff]
    %v1759 = vld [vmem:[#allocation10 + $0x20] sm:$0xff]
    %v1760 = vld [vmem:[#allocation10 + $0x28] sm:$0xff]
    %v1761 = vld [vmem:[#allocation10 + $0x30] sm:$0xff]
    %v1762 = vld [vmem:[#allocation10 + $0x38] sm:$0xff]
    %v1763 = vld [vmem:[#allocation10 + $0x40] sm:$0xff]
    %v1764 = vld [vmem:[#allocation10 + $0x48] sm:$0xff]
    %v1765 = vld [vmem:[#allocation10 + $0x50] sm:$0xff]
    %v1766 = vld [vmem:[#allocation10 + $0x58] sm:$0xff]
    %v1767 = vld [vmem:[#allocation10 + $0x60] sm:$0xff]
    %v1768 = vld [vmem:[#allocation10 + $0x68] sm:$0xff]
    %v1769 = vld [vmem:[#allocation10 + $0x70] sm:$0xff]
    %v1770 = vld [vmem:[#allocation10 + $0x78] sm:$0xff]
    %v1771 = vld [vmem:[#allocation10 + $0x80] sm:$0xff]
    %v1772 = vld [vmem:[#allocation10 + $0x88] sm:$0xff]
    %v1773 = vld [vmem:[#allocation10 + $0x90] sm:$0xff]
    %v1774 = vld [vmem:[#allocation10 + $0x98] sm:$0xff]
    %v1775 = vld [vmem:[#allocation10 + $0xa0] sm:$0xff]
    %v1776 = vld [vmem:[#allocation10 + $0xa8] sm:$0xff]
    %v1777 = vld [vmem:[#allocation10 + $0xb0] sm:$0xff]
    %v1778 = vld [vmem:[#allocation10 + $0xb8] sm:$0xff]
    %v1779 = vld [vmem:[#allocation10 + $0xc0] sm:$0xff]
    %v1780 = vld [vmem:[#allocation10 + $0xc8] sm:$0xff]
    %v1781 = vld [vmem:[#allocation10 + $0xd0] sm:$0xff]
    %v1782 = vld [vmem:[#allocation10 + $0xd8] sm:$0xff]
    %v1783 = vld [vmem:[#allocation10 + $0xe0] sm:$0xff]
    %v1784 = vld [vmem:[#allocation10 + $0xe8] sm:$0xff]
    %v1785 = vld [vmem:[#allocation10 + $0xf0] sm:$0xff]
    %v1786 = vld [vmem:[#allocation10 + $0xf8] sm:$0xff]
    %v1787 = vld [vmem:[#allocation10 + $0x100] sm:$0xff]
    %v1788 = vld [vmem:[#allocation10 + $0x108] sm:$0xff]
    %v1789 = vld [vmem:[#allocation10 + $0x110] sm:$0xff]
    %v1790 = vld [vmem:[#allocation10 + $0x118] sm:$0xff]
    %v1791 = vld [vmem:[#allocation10 + $0x120] sm:$0xff]
    %v1792 = vld [vmem:[#allocation10 + $0x128] sm:$0xff]
    %v1793 = vld [vmem:[#allocation10 + $0x130] sm:$0xff]
    %v1794 = vld [vmem:[#allocation10 + $0x138] sm:$0xff]
    %v1795 = vld [vmem:[#allocation10 + $0x140] sm:$0xff]
    %v1796 = vld [vmem:[#allocation10 + $0x148] sm:$0xff]
    %v1797 = vld [vmem:[#allocation10 + $0x150] sm:$0xff]
    %v1798 = vld [vmem:[#allocation10 + $0x158] sm:$0xff]
    %v1799 = vld [vmem:[#allocation10 + $0x160] sm:$0xff]
    %v1800 = vld [vmem:[#allocation10 + $0x168] sm:$0xff]
    %v1801 = vld [vmem:[#allocation10 + $0x170] sm:$0xff]
    %v1802 = vld [vmem:[#allocation10 + $0x178] sm:$0xff]
    %v1803 = vld [vmem:[#allocation10 + $0x180] sm:$0xff]
    %v1804 = vld [vmem:[#allocation10 + $0x188] sm:$0xff]
    %v1805 = vld [vmem:[#allocation10 + $0x190] sm:$0xff]
    %v1806 = vld [vmem:[#allocation10 + $0x198] sm:$0xff]
    %v1807 = vld [vmem:[#allocation10 + $0x1a0] sm:$0xff]
    %v1808 = vld [vmem:[#allocation10 + $0x1a8] sm:$0xff]
    %v1809 = vld [vmem:[#allocation10 + $0x1b0] sm:$0xff]
    %v1810 = vld [vmem:[#allocation10 + $0x1b8] sm:$0xff]
    %v1811 = vld [vmem:[#allocation10 + $0x1c0] sm:$0xff]
    %v1812 = vld [vmem:[#allocation10 + $0x1c8] sm:$0xff]
    %v1813 = vld [vmem:[#allocation10 + $0x1d0] sm:$0xff]
    %v1814 = vld [vmem:[#allocation10 + $0x1d8] sm:$0xff]
    %v1815 = vld [vmem:[#allocation10 + $0x1e0] sm:$0xff]
    %v1816 = vld [vmem:[#allocation10 + $0x1e8] sm:$0xff]
    %v1817 = vld [vmem:[#allocation10 + $0x1f0] sm:$0xff]
    %v1818 = vld [vmem:[#allocation10 + $0x1f8] sm:$0xff]
    %v1819 = vld [vmem:[#allocation10 + $0x200] sm:$0xff]
    %v1820 = vld [vmem:[#allocation10 + $0x208] sm:$0xff]
    %v1821 = vld [vmem:[#allocation10 + $0x210] sm:$0xff]
    %v1822 = vld [vmem:[#allocation10 + $0x218] sm:$0xff]
    %v1823 = vld [vmem:[#allocation10 + $0x220] sm:$0xff]
    %v1824 = vld [vmem:[#allocation10 + $0x228] sm:$0xff]
    %v1825 = vld [vmem:[#allocation10 + $0x230] sm:$0xff]
    %v1826 = vld [vmem:[#allocation10 + $0x238] sm:$0xff]
    %v1827 = vld [vmem:[#allocation10 + $0x240] sm:$0xff]
    %v1828 = vld [vmem:[#allocation10 + $0x248] sm:$0xff]
    %v1829 = vld [vmem:[#allocation10 + $0x250] sm:$0xff]
    %v1830 = vld [vmem:[#allocation10 + $0x258] sm:$0xff]
    %v1831 = vld [vmem:[#allocation10 + $0x260] sm:$0xff]
    %v1832 = vld [vmem:[#allocation10 + $0x268] sm:$0xff]
    %v1833 = vld [vmem:[#allocation10 + $0x270] sm:$0xff]
    %v1834 = vld [vmem:[#allocation10 + $0x278] sm:$0xff]
    %v1835 = vld [vmem:[#allocation10 + $0x280] sm:$0xff]
    %v1836 = vld [vmem:[#allocation10 + $0x288] sm:$0xff]
    %v1837 = vld [vmem:[#allocation10 + $0x290] sm:$0xff]
    %v1838 = vld [vmem:[#allocation10 + $0x298] sm:$0xff]
    %v1839 = vld [vmem:[#allocation10 + $0x2a0] sm:$0xff]
    %v1840 = vld [vmem:[#allocation10 + $0x2a8] sm:$0xff]
    %v1841 = vld [vmem:[#allocation10 + $0x2b0] sm:$0xff]
    %v1842 = vld [vmem:[#allocation10 + $0x2b8] sm:$0xff]
    %v1843 = vld [vmem:[#allocation10 + $0x2c0] sm:$0xff]
    %v1844 = vld [vmem:[#allocation10 + $0x2c8] sm:$0xff]
    %v1845 = vld [vmem:[#allocation10 + $0x2d0] sm:$0xff]
    %v1846 = vld [vmem:[#allocation10 + $0x2d8] sm:$0xff]
    %v1847 = vld [vmem:[#allocation10 + $0x2e0] sm:$0xff]
    %v1848 = vld [vmem:[#allocation10 + $0x2e8] sm:$0xff]
    %v1849 = vld [vmem:[#allocation10 + $0x2f0] sm:$0xff]
    %v1850 = vld [vmem:[#allocation10 + $0x2f8] sm:$0xff]
    %1851 = vmatprep.subr.mxu0 0.0
    %1852 = vmatpush1.msra.mxu0 %v1803
    %1853 = vmatprep.subr.mxu0 0.0
    %1854 = vmatpush1.msra.mxu0 %v1804
    %1855 = vmatprep.subr.mxu0 0.0
    %1856 = vmatpush1.msra.mxu0 %v1805
    %1857 = vmatprep.subr.mxu0 0.0
    %1858 = vmatpush1.msra.mxu0 %v1806
    %1859 = vmatprep.subr.mxu0 0.0
    %1860 = vmatpush1.msra.mxu0 %v1807
    %1861 = vmatprep.subr.mxu0 0.0
    %1862 = vmatpush1.msra.mxu0 %v1808
    %1863 = vmatprep.subr.mxu0 0.0
    %1864 = vmatpush1.msra.mxu0 %v1809
    %1865 = vmatprep.subr.mxu0 0.0
    %1866 = vmatpush1.msra.mxu0 %v1810
    %1867 = vmatprep.subr.mxu0 0.0
    %1868 = vmatpush1.msra.mxu0 %v1811
    %1869 = vmatprep.subr.mxu0 0.0
    %1870 = vmatpush1.msra.mxu0 %v1812
    %1871 = vmatprep.subr.mxu0 0.0
    %1872 = vmatpush1.msra.mxu0 %v1813
    %1873 = vmatprep.subr.mxu0 0.0
    %1874 = vmatpush1.msra.mxu0 %v1814
    %1875 = vmatprep.subr.mxu0 0.0
    %1876 = vmatpush1.msra.mxu0 %v1815
    %1877 = vmatprep.subr.mxu0 0.0
    %1878 = vmatpush1.msra.mxu0 %v1816
    %1879 = vmatprep.subr.mxu0 0.0
    %1880 = vmatpush1.msra.mxu0 %v1817
    %1881 = vmatprep.subr.mxu0 0.0
    %1882 = vmatpush1.msra.mxu0 %v1818
    %1883 = vmatprep.subr.mxu0 0.0
    %1884 = vmatpush1.msra.mxu0 %v1819
    %1885 = vmatprep.subr.mxu0 0.0
    %1886 = vmatpush1.msra.mxu0 %v1820
    %1887 = vmatprep.subr.mxu0 0.0
    %1888 = vmatpush1.msra.mxu0 %v1821
    %1889 = vmatprep.subr.mxu0 0.0
    %1890 = vmatpush1.msra.mxu0 %v1822
    %1891 = vmatprep.subr.mxu0 0.0
    %1892 = vmatpush1.msra.mxu0 %v1823
    %1893 = vmatprep.subr.mxu0 0.0
    %1894 = vmatpush1.msra.mxu0 %v1824
    %1895 = vmatprep.subr.mxu0 0.0
    %1896 = vmatpush1.msra.mxu0 %v1825
    %1897 = vmatprep.subr.mxu0 0.0
    %1898 = vmatpush1.msra.mxu0 %v1826
    %1899 = vmatprep.subr.mxu0 0.0
    %1900 = vmatpush1.msra.mxu0 %v1827
    %1901 = vmatprep.subr.mxu0 0.0
    %1902 = vmatpush1.msra.mxu0 %v1828
    %1903 = vmatprep.subr.mxu0 0.0
    %1904 = vmatpush1.msra.mxu0 %v1829
    %1905 = vmatprep.subr.mxu0 0.0
    %1906 = vmatpush1.msra.mxu0 %v1830
    %1907 = vmatprep.subr.mxu0 0.0
    %1908 = vmatpush1.msra.mxu0 %v1831
    %1909 = vmatprep.subr.mxu0 0.0
    %1910 = vmatpush1.msra.mxu0 %v1832
    %1911 = vmatprep.subr.mxu0 0.0
    %1912 = vmatpush1.msra.mxu0 %v1833
    %1913 = vmatprep.subr.mxu0 0.0
    %1914 = vmatpush1.msra.mxu0 %v1834
    %1915 = vmatprep.mubr.f32.mxu0 %v1753
    %1916 = vmatmul.mubr.f32.gmra.mrb[0].mxu0 %v1752
    %v1917 = vpop.f32.mrb[0].mxu0
    %v1918 = vadd.f32 0.0, %v1917
    %v1919 = vpop.f32.mrb[0].mxu0
    %1920 = vdwg.mxu0
    %1921 = vmatprep.subr.mxu0 0.0
    %1922 = vmatpush1.msra.mxu0 %v1835
    %1923 = vmatprep.subr.mxu0 0.0
    %1924 = vmatpush1.msra.mxu0 %v1836
    %1925 = vmatprep.subr.mxu0 0.0
    %1926 = vmatpush1.msra.mxu0 %v1837
    %1927 = vmatprep.subr.mxu0 0.0
    %1928 = vmatpush1.msra.mxu0 %v1838
    %1929 = vmatprep.subr.mxu0 0.0
    %1930 = vmatpush1.msra.mxu0 %v1839
    %1931 = vmatprep.subr.mxu0 0.0
    %1932 = vmatpush1.msra.mxu0 %v1840
    %1933 = vmatprep.subr.mxu0 0.0
    %1934 = vmatpush1.msra.mxu0 %v1841
    %1935 = vmatprep.subr.mxu0 0.0
    %1936 = vmatpush1.msra.mxu0 %v1842
    %1937 = vmatprep.subr.mxu0 0.0
    %1938 = vmatpush1.msra.mxu0 %v1843
    %1939 = vmatprep.subr.mxu0 0.0
    %1940 = vmatpush1.msra.mxu0 %v1844
    %1941 = vmatprep.subr.mxu0 0.0
    %1942 = vmatpush1.msra.mxu0 %v1845
    %1943 = vmatprep.subr.mxu0 0.0
    %1944 = vmatpush1.msra.mxu0 %v1846
    %1945 = vmatprep.subr.mxu0 0.0
    %1946 = vmatpush1.msra.mxu0 %v1847
    %1947 = vmatprep.subr.mxu0 0.0
    %1948 = vmatpush1.msra.mxu0 %v1848
    %1949 = vmatprep.subr.mxu0 0.0
    %1950 = vmatpush1.msra.mxu0 %v1849
    %1951 = vmatprep.subr.mxu0 0.0
    %1952 = vmatpush1.msra.mxu0 %v1850
    %1953 = vmatprep.subr.mxu0 0.0
    %1954 = vmatpush1.msra.mxu0 0.0
    %1955 = vmatprep.subr.mxu0 0.0
    %1956 = vmatpush1.msra.mxu0 0.0
    %1957 = vmatprep.subr.mxu0 0.0
    %1958 = vmatpush1.msra.mxu0 0.0
    %1959 = vmatprep.subr.mxu0 0.0
    %1960 = vmatpush1.msra.mxu0 0.0
    %1961 = vmatprep.subr.mxu0 0.0
    %1962 = vmatpush1.msra.mxu0 0.0
    %1963 = vmatprep.subr.mxu0 0.0
    %1964 = vmatpush1.msra.mxu0 0.0
    %1965 = vmatprep.subr.mxu0 0.0
    %1966 = vmatpush1.msra.mxu0 0.0
    %1967 = vmatprep.subr.mxu0 0.0
    %1968 = vmatpush1.msra.mxu0 0.0
    %1969 = vmatprep.subr.mxu0 0.0
    %1970 = vmatpush1.msra.mxu0 0.0
    %1971 = vmatprep.subr.mxu0 0.0
    %1972 = vmatpush1.msra.mxu0 0.0
    %1973 = vmatprep.subr.mxu0 0.0
    %1974 = vmatpush1.msra.mxu0 0.0
    %1975 = vmatprep.subr.mxu0 0.0
    %1976 = vmatpush1.msra.mxu0 0.0
    %1977 = vmatprep.subr.mxu0 0.0
    %1978 = vmatpush1.msra.mxu0 0.0
    %1979 = vmatprep.subr.mxu0 0.0
    %1980 = vmatpush1.msra.mxu0 0.0
    %1981 = vmatprep.subr.mxu0 0.0
    %1982 = vmatpush1.msra.mxu0 0.0
    %1983 = vmatprep.subr.mxu0 0.0
    %1984 = vmatpush1.msra.mxu0 0.0
    %1985 = vmatprep.mubr.f32.mxu0 0.0
    %1986 = vmatmul.mubr.f32.gmra.mrb[0].mxu0 %v1754
    %v1987 = vpop.f32.mrb[0].mxu0
    %v1988 = vadd.f32 %v1918, %v1987
    %v1989 = vpop.f32.mrb[0].mxu0
    %1990 = vdwg.mxu0
    %1991 = vmatprep.subr.mxu0 0.0
    %1992 = vmatpush1.msra.mxu0 %v1755
    %1993 = vmatprep.subr.mxu0 0.0
    %1994 = vmatpush1.msra.mxu0 %v1756
    %1995 = vmatprep.subr.mxu0 0.0
    %1996 = vmatpush1.msra.mxu0 %v1757
    %1997 = vmatprep.subr.mxu0 0.0
    %1998 = vmatpush1.msra.mxu0 %v1758
    %1999 = vmatprep.subr.mxu0 0.0
    %2000 = vmatpush1.msra.mxu0 %v1759
    %2001 = vmatprep.subr.mxu0 0.0
    %2002 = vmatpush1.msra.mxu0 %v1760
    %2003 = vmatprep.subr.mxu0 0.0
    %2004 = vmatpush1.msra.mxu0 %v1761
    %2005 = vmatprep.subr.mxu0 0.0
    %2006 = vmatpush1.msra.mxu0 %v1762
    %2007 = vmatprep.subr.mxu0 0.0
    %2008 = vmatpush1.msra.mxu0 %v1763
    %2009 = vmatprep.subr.mxu0 0.0
    %2010 = vmatpush1.msra.mxu0 %v1764
    %2011 = vmatprep.subr.mxu0 0.0
    %2012 = vmatpush1.msra.mxu0 %v1765
    %2013 = vmatprep.subr.mxu0 0.0
    %2014 = vmatpush1.msra.mxu0 %v1766
    %2015 = vmatprep.subr.mxu0 0.0
    %2016 = vmatpush1.msra.mxu0 %v1767
    %2017 = vmatprep.subr.mxu0 0.0
    %2018 = vmatpush1.msra.mxu0 %v1768
    %2019 = vmatprep.subr.mxu0 0.0
    %2020 = vmatpush1.msra.mxu0 %v1769
    %2021 = vmatprep.subr.mxu0 0.0
    %2022 = vmatpush1.msra.mxu0 %v1770
    %2023 = vmatprep.subr.mxu0 0.0
    %2024 = vmatpush1.msra.mxu0 %v1771
    %2025 = vmatprep.subr.mxu0 0.0
    %2026 = vmatpush1.msra.mxu0 %v1772
    %2027 = vmatprep.subr.mxu0 0.0
    %2028 = vmatpush1.msra.mxu0 %v1773
    %2029 = vmatprep.subr.mxu0 0.0
    %2030 = vmatpush1.msra.mxu0 %v1774
    %2031 = vmatprep.subr.mxu0 0.0
    %2032 = vmatpush1.msra.mxu0 %v1775
    %2033 = vmatprep.subr.mxu0 0.0
    %2034 = vmatpush1.msra.mxu0 %v1776
    %2035 = vmatprep.subr.mxu0 0.0
    %2036 = vmatpush1.msra.mxu0 %v1777
    %2037 = vmatprep.subr.mxu0 0.0
    %2038 = vmatpush1.msra.mxu0 %v1778
    %2039 = vmatprep.subr.mxu0 0.0
    %2040 = vmatpush1.msra.mxu0 %v1779
    %2041 = vmatprep.subr.mxu0 0.0
    %2042 = vmatpush1.msra.mxu0 %v1780
    %2043 = vmatprep.subr.mxu0 0.0
    %2044 = vmatpush1.msra.mxu0 %v1781
    %2045 = vmatprep.subr.mxu0 0.0
    %2046 = vmatpush1.msra.mxu0 %v1782
    %2047 = vmatprep.subr.mxu0 0.0
    %2048 = vmatpush1.msra.mxu0 %v1783
    %2049 = vmatprep.subr.mxu0 0.0
    %2050 = vmatpush1.msra.mxu0 %v1784
    %2051 = vmatprep.subr.mxu0 0.0
    %2052 = vmatpush1.msra.mxu0 %v1785
    %2053 = vmatprep.subr.mxu0 0.0
    %2054 = vmatpush1.msra.mxu0 %v1786
    %2055 = vmatprep.mubr.f32.mxu0 %v1259
    %2056 = vmatmul.mubr.f32.gmra.mrb[0].mxu0 %v1258
    %v2057 = vpop.f32.mrb[0].mxu0
    %v2058 = vadd.f32 %v1988, %v2057
    %v2059 = vpop.f32.mrb[0].mxu0
    %2060 = vdwg.mxu0
    %2061 = vmatprep.subr.mxu0 0.0
    %2062 = vmatpush1.msra.mxu0 %v1787
    %2063 = vmatprep.subr.mxu0 0.0
    %2064 = vmatpush1.msra.mxu0 %v1788
    %2065 = vmatprep.subr.mxu0 0.0
    %2066 = vmatpush1.msra.mxu0 %v1789
    %2067 = vmatprep.subr.mxu0 0.0
    %2068 = vmatpush1.msra.mxu0 %v1790
    %2069 = vmatprep.subr.mxu0 0.0
    %2070 = vmatpush1.msra.mxu0 %v1791
    %2071 = vmatprep.subr.mxu0 0.0
    %2072 = vmatpush1.msra.mxu0 %v1792
    %2073 = vmatprep.subr.mxu0 0.0
    %2074 = vmatpush1.msra.mxu0 %v1793
    %2075 = vmatprep.subr.mxu0 0.0
    %2076 = vmatpush1.msra.mxu0 %v1794
    %2077 = vmatprep.subr.mxu0 0.0
    %2078 = vmatpush1.msra.mxu0 %v1795
    %2079 = vmatprep.subr.mxu0 0.0
    %2080 = vmatpush1.msra.mxu0 %v1796
    %2081 = vmatprep.subr.mxu0 0.0
    %2082 = vmatpush1.msra.mxu0 %v1797
    %2083 = vmatprep.subr.mxu0 0.0
    %2084 = vmatpush1.msra.mxu0 %v1798
    %2085 = vmatprep.subr.mxu0 0.0
    %2086 = vmatpush1.msra.mxu0 %v1799
    %2087 = vmatprep.subr.mxu0 0.0
    %2088 = vmatpush1.msra.mxu0 %v1800
    %2089 = vmatprep.subr.mxu0 0.0
    %2090 = vmatpush1.msra.mxu0 %v1801
    %2091 = vmatprep.subr.mxu0 0.0
    %2092 = vmatpush1.msra.mxu0 %v1802
    %2093 = vmatprep.subr.mxu0 0.0
    %2094 = vmatpush1.msra.mxu0 0.0
    %2095 = vmatprep.subr.mxu0 0.0
    %2096 = vmatpush1.msra.mxu0 0.0
    %2097 = vmatprep.subr.mxu0 0.0
    %2098 = vmatpush1.msra.mxu0 0.0
    %2099 = vmatprep.subr.mxu0 0.0
    %2100 = vmatpush1.msra.mxu0 0.0
    %2101 = vmatprep.subr.mxu0 0.0
    %2102 = vmatpush1.msra.mxu0 0.0
    %2103 = vmatprep.subr.mxu0 0.0
    %2104 = vmatpush1.msra.mxu0 0.0
    %2105 = vmatprep.subr.mxu0 0.0
    %2106 = vmatpush1.msra.mxu0 0.0
    %2107 = vmatprep.subr.mxu0 0.0
    %2108 = vmatpush1.msra.mxu0 0.0
    %2109 = vmatprep.subr.mxu0 0.0
    %2110 = vmatpush1.msra.mxu0 0.0
    %2111 = vmatprep.subr.mxu0 0.0
    %2112 = vmatpush1.msra.mxu0 0.0
    %2113 = vmatprep.subr.mxu0 0.0
    %2114 = vmatpush1.msra.mxu0 0.0
    %2115 = vmatprep.subr.mxu0 0.0
    %2116 = vmatpush1.msra.mxu0 0.0
    %2117 = vmatprep.subr.mxu0 0.0
    %2118 = vmatpush1.msra.mxu0 0.0
    %2119 = vmatprep.subr.mxu0 0.0
    %2120 = vmatpush1.msra.mxu0 0.0
    %2121 = vmatprep.subr.mxu0 0.0
    %2122 = vmatpush1.msra.mxu0 0.0
    %2123 = vmatprep.subr.mxu0 0.0
    %2124 = vmatpush1.msra.mxu0 0.0
    %2125 = vmatprep.mubr.f32.mxu0 0.0
    %2126 = vmatmul.mubr.f32.gmra.mrb[0].mxu0 %v1260
    %v2127 = vpop.f32.mrb[0].mxu0
    %v2128 = vadd.f32 %v2058, %v2127
    %v2129 = vpop.f32.mrb[0].mxu0
    %2130 = vdwg.mxu0
    %v2131 = vld [vmem:[%s7 + $0xe] sm:$0x1]
    %v2133 = vlaneseq
    %v2134 = vshrl.u32 %v2133, 7
    %v2135 = vsub.s32 0, %v2134
    %v2136 = vrot.slane %v2131, %v2135
    %v2138 = vadd.f32 %v2128, %v2136
    %2139 = vst [vmem:[#allocation11] sm:$0xff] %v2138
    // Predicated region
    $region54: #{tpu_custom_call.1} parent=1 // pred_check
      _
    $region55: #{tpu_custom_call.1} parent=1 // pred_check_branch
      %2141 = sbr.rel (0) target = $region57
    $region56: #{tpu_custom_call.1} parent=1 // pred_region
      %s2143 = ssub.s32 128, 128
      %2144 = vsyncadd [#allocation4], %s2143
      %s2146 = sshll.u32 [#allocation11], 4
      %s2147 = int_to_ptr.vmem [resolvable:$true] %s2146
      %2149 = dma.vmem_to_hbm [thread:$0]  %s2147, 128, %s8, [#allocation4]
    $region57: #{tpu_custom_call.1} parent=1 // pred_fallthru
      _
    // Predicated region
    $region58: #{tpu_custom_call.1} parent=1 // pred_check
      _
    $region59: #{tpu_custom_call.1} parent=1 // pred_check_branch
      %2151 = sbr.rel (0) target = $region61
    $region60: #{tpu_custom_call.1} parent=1 // pred_region
      %2152 = dma.done [#allocation4], 128
    $region61: #{tpu_custom_call.1} parent=1 // pred_fallthru
      _
    %2153 = vsyncpa [#allocation3], 1
    %2154 = vsyncpa [#allocation6], 1
    %2155 = vsyncpa [#allocation9], 1
    %2156 = vsyncpa [#allocation4], 1

</llo_original>
